<compile_context>
chip_gen: v7x
topology: tpu7x:2x2x1
jax: 0.10.0
libtpu: 0.0.40
codegen_flags: <defaults>
</compile_context>

<pallas_src>
import functools
import math

import jax
import jax.numpy as jnp
import numpy as np
from jax.experimental import pallas as pl
from jax.experimental.pallas import tpu as pltpu

# ----------------------------- config (small) -------------------------------
BATCH = 2
SEQ = 8
HIDDEN = 32
NUM_HEADS = 2
HEAD_DIM = HIDDEN // NUM_HEADS
INTERMEDIATE = 64
NUM_LAYERS = 3
KNOWLEDGE_STEP = 2
LN_EPS = 1e-12
# Fold the whole batch into one block (grid ~ (1, L)).  On v7x set this to
# BATCH // 2 so the leading "parallel" grid axis feeds both TensorCores.
BATCH_TILE = BATCH


# ------------------------------ shared helpers ------------------------------
def _layer_norm(x, gamma, beta, eps):
    mu = jnp.mean(x, axis=-1, keepdims=True)
    var = jnp.mean(jnp.square(x - mu), axis=-1, keepdims=True)
    return (x - mu) * jax.lax.rsqrt(var + eps) * gamma + beta


def _gelu(x):
    # TODO(synk): PyTorch/HF default is the exact erf GELU; erf is not
    # guaranteed to lower in Mosaic, so the tanh form (<~1e-3 abs deviation)
    # is used in both the kernel and the in-script reference.
    c = math.sqrt(2.0 / math.pi)
    return 0.5 * x * (1.0 + jnp.tanh(c * (x + 0.044715 * x * x * x)))


# --------------------------- fused encoder kernel ---------------------------
def fused_encoder_kernel(h_ref, bias_ref, cls_ref,
                         wqkv_ref, bqkv_ref, wo_ref, wi_ref, bi_ref, wd_ref,
                         vec_ref, gw_ref, gb_ref, o_ref, *,
                         num_heads, head_dim, hidden, num_layers,
                         knowledge_step, eps):
    l = pl.program_id(1)
    f32 = jnp.float32

    # Resident activations: input tile on layer 0, otherwise the previous
    # layer's output still sitting in the output VMEM buffer (branchless
    # select -> no pl.when init, no store->load hazard).
    x = jnp.where(l == 0, h_ref[...], o_ref[...])                     # (R, H)

    # ---- knowledge / GCN CLS update (registers, branch-free gate) ----------
    # Directed protein->GO edges + GCNConv self-loop sym-norm => protein rows
    # collapse to cls @ W_gcn + b_gcn; computed for all rows (one tiny matmul)
    # and spliced into the CLS rows only on knowledge layers.
    lp1 = l + 1
    is_k = jnp.where(jnp.logical_or(lp1 % knowledge_step == 0,
                                    lp1 == num_layers), 1.0, 0.0)
    gcn = jnp.dot(x, gw_ref[...], preferred_element_type=f32) + gb_ref[...]
    gate = cls_ref[...] * is_k                                        # (R, 1)
    x = x + gate * (gcn - x)

    # ---- self-attention (fused QKV, per-head 2D dots, no stacks) -----------
    qkv = jnp.dot(x, wqkv_ref[l], preferred_element_type=f32) + bqkv_ref[l]
    bias = bias_ref[0]                                                # (R, R)
    scale = 1.0 / math.sqrt(head_dim)

    ctx_heads = []
    for n in range(num_heads):               # tiny static loop
        q = qkv[:, n * head_dim:(n + 1) * head_dim] * scale
        k = qkv[:, hidden + n * head_dim: hidden + (n + 1) * head_dim]
        v = qkv[:, 2 * hidden + n * head_dim: 2 * hidden + (n + 1) * head_dim]
        s = jax.lax.dot_general(q, k, (((1,), (1,)), ((), ())),
                                preferred_element_type=f32) + bias
        m = jnp.max(s, axis=-1, keepdims=True)
        p = jnp.exp(s - m)
        p = p * pl.reciprocal(jnp.sum(p, axis=-1, keepdims=True), approx=True)
        ctx_heads.append(jnp.dot(p, v, preferred_element_type=f32))
    ctx = jnp.concatenate(ctx_heads, axis=-1)                         # (R, H)

    vec = vec_ref[l]                          # (6, H): bo, g1, b1, bd, g2, b2
    attn = jnp.dot(ctx, wo_ref[l], preferred_element_type=f32) + vec[0:1]
    h1 = _layer_norm(x + attn, vec[1:2], vec[2:3], eps)

    # ---- feed-forward -------------------------------------------------------
    inter = _gelu(jnp.dot(h1, wi_ref[l], preferred_element_type=f32) + bi_ref[l])
    ffn = jnp.dot(inter, wd_ref[l], preferred_element_type=f32) + vec[3:4]
    o_ref[...] = _layer_norm(h1 + ffn, vec[4:5], vec[5:6], eps)


# ------------------------------- host wrapper --------------------------------
def knowledge_bert_forward(hidden, add_mask, params, *, batch_tile=BATCH_TILE):
    B, S, H = hidden.shape
    L, NH, HD, I = NUM_LAYERS, NUM_HEADS, HEAD_DIM, INTERMEDIATE
    assert B % batch_tile == 0
    nchunks = B // batch_tile
    R = batch_tile * S

    def stack(name):
        return jnp.stack([lp[name] for lp in params["layers"]], axis=0)

    # Pack per-layer weights into a few stacked arrays (one BlockSpec each).
    w_qkv = jnp.concatenate([stack("wq"), stack("wk"), stack("wv")], axis=-1)  # (L,H,3H)
    b_qkv = jnp.concatenate([stack("bq"), stack("bk"), stack("bv")], axis=-1)  # (L,1,3H)
    w_o = stack("wo")                                                          # (L,H,H)
    w_i = stack("wi")                                                          # (L,H,I)
    b_i = stack("bi")                                                          # (L,1,I)
    w_d = stack("wd")                                                          # (L,I,H)
    vecs = jnp.concatenate([stack("bo"), stack("g1"), stack("b1"),
                            stack("bd"), stack("g2"), stack("b2")], axis=1)    # (L,6,H)

    # Combined additive attention bias per batch chunk: HF-style key mask plus
    # block-diagonal cross-sequence masking (batch is folded into the rows).
    neg = jnp.float32(jnp.finfo(jnp.float32).min)
    key_bias = add_mask.astype(jnp.float32).reshape(nchunks, 1, R)
    key_bias = jnp.broadcast_to(key_bias, (nchunks, R, R))
    seq_id = jnp.arange(R, dtype=jnp.int32) // S
    same_seq = seq_id[:, None] == seq_id[None, :]
    attn_bias = jnp.where(same_seq[None], key_bias, neg)                       # (nc,R,R)

    # CLS-row gate (1.0 on row 0 of every sequence) -- avoids in-kernel iota/mod.
    cls_rows = (jnp.arange(R, dtype=jnp.int32) % S == 0)
    cls_rows = cls_rows.astype(jnp.float32).reshape(R, 1)

    hid_flat = hidden.reshape(B * S, H)

    def cspec(arr):                      # grid-constant: fetched once, VMEM-resident
        nd = arr.ndim
        return pl.BlockSpec(arr.shape, lambda b, l, _nd=nd: (0,) * _nd)

    in_specs = [
        pl.BlockSpec((R, H), lambda b, l: (b, 0)),          # activations (flat rows)
        pl.BlockSpec((1, R, R), lambda b, l: (b, 0, 0)),    # attention bias
        cspec(cls_rows),
        cspec(w_qkv), cspec(b_qkv), cspec(w_o), cspec(w_i), cspec(b_i),
        cspec(w_d), cspec(vecs),
        cspec(params["gcn_w"]), cspec(params["gcn_b"]),
    ]

    kernel = functools.partial(
        fused_encoder_kernel, num_heads=NH, head_dim=HD, hidden=H,
        num_layers=L, knowledge_step=KNOWLEDGE_STEP, eps=LN_EPS)

    # TODO(synk): at real BERT widths (H=768, I=3072) switch weights back to
    # per-layer blocked specs, cast matmul operands to bf16 (f32 accumulate),
    # tile the FFN N dim and set vmem_limit_bytes (v7x has only 64 MiB VMEM).
    out_flat = pl.pallas_call(
        kernel,
        out_shape=jax.ShapeDtypeStruct((B * S, H), jnp.float32),
        grid=(nchunks, L),                # batch chunks parallel, layers sequential
        in_specs=in_specs,
        out_specs=pl.BlockSpec((R, H), lambda b, l: (b, 0)),
        compiler_params=pltpu.CompilerParams(
            dimension_semantics=("parallel", "arbitrary")),
    )(hid_flat, attn_bias, cls_rows, w_qkv, b_qkv, w_o, w_i, b_i, w_d, vecs,
      params["gcn_w"], params["gcn_b"])
    return out_flat.reshape(B, S, H)


# ----------------------------- pure-JAX reference ---------------------------
def _ref_layer(x, add_mask, lp):
    B, S, H = x.shape
    q = x @ lp["wq"] + lp["bq"][0]
    k = x @ lp["wk"] + lp["bk"][0]
    v = x @ lp["wv"] + lp["bv"][0]
    q = q.reshape(B, S, NUM_HEADS, HEAD_DIM).transpose(0, 2, 1, 3)
    k = k.reshape(B, S, NUM_HEADS, HEAD_DIM).transpose(0, 2, 1, 3)
    v = v.reshape(B, S, NUM_HEADS, HEAD_DIM).transpose(0, 2, 1, 3)
    s = jnp.einsum("bnqd,bnkd->bnqk", q, k) / math.sqrt(HEAD_DIM)
    s = s + add_mask[:, None, None, :]
    p = jax.nn.softmax(s, axis=-1)
    ctx = jnp.einsum("bnqk,bnkd->bnqd", p, v).transpose(0, 2, 1, 3).reshape(B, S, H)
    attn = ctx @ lp["wo"] + lp["bo"][0]
    h1 = _layer_norm(x + attn, lp["g1"][0], lp["b1"][0], LN_EPS)
    ffn = _gelu(h1 @ lp["wi"] + lp["bi"][0]) @ lp["wd"] + lp["bd"][0]
    return _layer_norm(h1 + ffn, lp["g2"][0], lp["b2"][0], LN_EPS)


def _ref_forward(hidden, add_mask, params):
    for i in range(NUM_LAYERS):
        if (i + 1) % KNOWLEDGE_STEP == 0 or (i + 1) == NUM_LAYERS:
            kcls = hidden[:, 0, :] @ params["gcn_w"] + params["gcn_b"][0]
            hidden = jnp.concatenate([kcls[:, None, :], hidden[:, 1:, :]], axis=1)
        hidden = _ref_layer(hidden, add_mask, params["layers"][i])
    return hidden


# --------------------------------- params -----------------------------------
def init_params(key):
    def dense(k, shape):
        return (0.02 * jax.random.normal(k, shape, jnp.float32)).astype(jnp.float32)

    layers = []
    for i in range(NUM_LAYERS):
        lk = jax.random.fold_in(key, i)
        ks = jax.random.split(lk, 8)
        layers.append(dict(
            wq=dense(ks[0], (HIDDEN, HIDDEN)), bq=jnp.zeros((1, HIDDEN), jnp.float32),
            wk=dense(ks[1], (HIDDEN, HIDDEN)), bk=jnp.zeros((1, HIDDEN), jnp.float32),
            wv=dense(ks[2], (HIDDEN, HIDDEN)), bv=jnp.zeros((1, HIDDEN), jnp.float32),
            wo=dense(ks[3], (HIDDEN, HIDDEN)), bo=jnp.zeros((1, HIDDEN), jnp.float32),
            g1=jnp.ones((1, HIDDEN), jnp.float32), b1=jnp.zeros((1, HIDDEN), jnp.float32),
            wi=dense(ks[4], (HIDDEN, INTERMEDIATE)), bi=jnp.zeros((1, INTERMEDIATE), jnp.float32),
            wd=dense(ks[5], (INTERMEDIATE, HIDDEN)), bd=jnp.zeros((1, HIDDEN), jnp.float32),
            g2=jnp.ones((1, HIDDEN), jnp.float32), b2=jnp.zeros((1, HIDDEN), jnp.float32),
        ))
    gk = jax.random.fold_in(key, 1000)
    return dict(layers=layers,
                gcn_w=dense(gk, (HIDDEN, HIDDEN)),
                gcn_b=jnp.zeros((1, HIDDEN), jnp.float32))


# ----------------------------------- main ------------------------------------
if __name__ == "__main__":
    key = jax.random.PRNGKey(0)
    k_h, k_p = jax.random.split(key)

    hidden_states = jax.random.normal(k_h, (BATCH, SEQ, HIDDEN), jnp.float32)
    attention_mask = jnp.ones((BATCH, SEQ), jnp.float32).at[1, SEQ - 1].set(0.0)
    # HF-style extended additive mask, collapsed to (B, S).
    add_mask = (1.0 - attention_mask) * jnp.finfo(jnp.float32).min

    params = init_params(k_p)

    out = knowledge_bert_forward(hidden_states, add_mask, params)
    out = jax.block_until_ready(out)

    ref = _ref_forward(hidden_states, add_mask, params)
    np.testing.assert_allclose(np.asarray(out), np.asarray(ref), rtol=5e-2, atol=5e-2)

    print("KERNEL_OK")
</pallas_src>

<mosaic_0001>
module attributes {stable_mosaic.version = 11 : i64} {
  func.func @fused_encoder_kernel(%arg0: i32, %arg1: i32, %arg2: memref<16x32xf32, #tpu.memory_space<vmem>>, %arg3: memref<1x16x16xf32, #tpu.memory_space<vmem>>, %arg4: memref<16x1xf32, #tpu.memory_space<vmem>>, %arg5: memref<3x32x96xf32, #tpu.memory_space<vmem>>, %arg6: memref<3x1x96xf32, #tpu.memory_space<vmem>>, %arg7: memref<3x32x32xf32, #tpu.memory_space<vmem>>, %arg8: memref<3x32x64xf32, #tpu.memory_space<vmem>>, %arg9: memref<3x1x64xf32, #tpu.memory_space<vmem>>, %arg10: memref<3x64x32xf32, #tpu.memory_space<vmem>>, %arg11: memref<3x6x32xf32, #tpu.memory_space<vmem>>, %arg12: memref<32x32xf32, #tpu.memory_space<vmem>>, %arg13: memref<1x32xf32, #tpu.memory_space<vmem>>, %arg14: memref<16x32xf32, #tpu.memory_space<vmem>>) attributes {dimension_semantics = [#tpu.dimension_semantics<parallel>, #tpu.dimension_semantics<arbitrary>], iteration_bounds = array<i64: 1, 3>, scalar_prefetch = 0 : i64, scratch_operands = 0 : i64, tpu.core_type = #tpu.core_type<tc>, window_params = [{transform_indices = @transform_0, window_bounds = array<i64: 16, 32>}, {transform_indices = @transform_1, window_bounds = array<i64: 1, 16, 16>}, {pipeline_mode = #tpu.pipeline_mode<synchronous>, transform_indices = @transform_2, window_bounds = array<i64: 16, 1>}, {pipeline_mode = #tpu.pipeline_mode<synchronous>, transform_indices = @transform_3, window_bounds = array<i64: 3, 32, 96>}, {pipeline_mode = #tpu.pipeline_mode<synchronous>, transform_indices = @transform_4, window_bounds = array<i64: 3, 1, 96>}, {pipeline_mode = #tpu.pipeline_mode<synchronous>, transform_indices = @transform_5, window_bounds = array<i64: 3, 32, 32>}, {pipeline_mode = #tpu.pipeline_mode<synchronous>, transform_indices = @transform_6, window_bounds = array<i64: 3, 32, 64>}, {pipeline_mode = #tpu.pipeline_mode<synchronous>, transform_indices = @transform_7, window_bounds = array<i64: 3, 1, 64>}, {pipeline_mode = #tpu.pipeline_mode<synchronous>, transform_indices = @transform_8, window_bounds = array<i64: 3, 64, 32>}, {pipeline_mode = #tpu.pipeline_mode<synchronous>, transform_indices = @transform_9, window_bounds = array<i64: 3, 6, 32>}, {pipeline_mode = #tpu.pipeline_mode<synchronous>, transform_indices = @transform_10, window_bounds = array<i64: 32, 32>}, {pipeline_mode = #tpu.pipeline_mode<synchronous>, transform_indices = @transform_11, window_bounds = array<i64: 1, 32>}, {transform_indices = @transform_12, window_bounds = array<i64: 16, 32>}]} {
    %c0_i32 = arith.constant 0 : i32
    %0 = arith.cmpi eq, %arg1, %c0_i32 : i32
    %c0 = arith.constant 0 : index
    %c0_0 = arith.constant 0 : index
    %1 = vector.load %arg2[%c0, %c0_0] : memref<16x32xf32, #tpu.memory_space<vmem>>, vector<16x32xf32>
    %c0_1 = arith.constant 0 : index
    %c0_2 = arith.constant 0 : index
    %2 = vector.load %arg14[%c0_1, %c0_2] : memref<16x32xf32, #tpu.memory_space<vmem>>, vector<16x32xf32>
    %3 = arith.select %0, %1, %2 : vector<16x32xf32>
    %c1_i32 = arith.constant 1 : i32
    %4 = arith.addi %arg1, %c1_i32 : i32
    %c2_i32 = arith.constant 2 : i32
    %c0_i32_3 = arith.constant 0 : i32
    %5 = arith.cmpi eq, %c2_i32, %c0_i32_3 : i32
    %c1_i32_4 = arith.constant 1 : i32
    %6 = arith.select %5, %c1_i32_4, %c2_i32 : i32
    %7 = arith.remsi %4, %6 : i32
    %c0_i32_5 = arith.constant 0 : i32
    %8 = arith.cmpi ne, %7, %c0_i32_5 : i32
    %c0_i32_6 = arith.constant 0 : i32
    %9 = arith.cmpi slt, %7, %c0_i32_6 : i32
    %c0_i32_7 = arith.constant 0 : i32
    %10 = arith.cmpi slt, %6, %c0_i32_7 : i32
    %11 = arith.xori %9, %10 : i1
    %12 = arith.andi %11, %8 : i1
    %13 = arith.addi %7, %6 : i32
    %14 = arith.select %12, %13, %7 : i32
    %c0_i32_8 = arith.constant 0 : i32
    %15 = arith.cmpi eq, %14, %c0_i32_8 : i32
    %c3_i32 = arith.constant 3 : i32
    %16 = arith.cmpi eq, %4, %c3_i32 : i32
    %17 = arith.ori %15, %16 : i1
    %cst = arith.constant 1.000000e+00 : f32
    %cst_9 = arith.constant 0.000000e+00 : f32
    %18 = arith.select %17, %cst, %cst_9 : f32
    %c0_10 = arith.constant 0 : index
    %c0_11 = arith.constant 0 : index
    %19 = vector.load %arg12[%c0_10, %c0_11] : memref<32x32xf32, #tpu.memory_space<vmem>>, vector<32x32xf32>
    %cst_12 = arith.constant dense<0.000000e+00> : vector<16x32xf32>
    %20 = tpu.matmul %3, %19, %cst_12 {dimension_numbers = #tpu.dot_dimension_numbers<[1], [0], [0], [1], [0, 0, 1, 1], [], []>} : vector<16x32xf32>, vector<32x32xf32>, vector<16x32xf32> -> vector<16x32xf32>
    %c0_13 = arith.constant 0 : index
    %c0_14 = arith.constant 0 : index
    %21 = vector.load %arg13[%c0_13, %c0_14] : memref<1x32xf32, #tpu.memory_space<vmem>>, vector<1x32xf32>
    %22 = vector.broadcast %21 : vector<1x32xf32> to vector<16x32xf32>
    %23 = arith.addf %20, %22 : vector<16x32xf32>
    %c0_15 = arith.constant 0 : index
    %c0_16 = arith.constant 0 : index
    %24 = vector.load %arg4[%c0_15, %c0_16] : memref<16x1xf32, #tpu.memory_space<vmem>>, vector<16x1xf32>
    %25 = vector.broadcast %18 : f32 to vector<16x1xf32>
    %26 = arith.mulf %24, %25 : vector<16x1xf32>
    %27 = arith.subf %23, %3 : vector<16x32xf32>
    %28 = vector.broadcast %26 : vector<16x1xf32> to vector<16x32xf32>
    %29 = arith.mulf %28, %27 : vector<16x32xf32>
    %30 = arith.addf %3, %29 : vector<16x32xf32>
    %31 = arith.index_cast %arg1 : i32 to index
    %c0_17 = arith.constant 0 : index
    %c0_18 = arith.constant 0 : index
    %32 = vector.load %arg5[%31, %c0_17, %c0_18] : memref<3x32x96xf32, #tpu.memory_space<vmem>>, vector<1x32x96xf32>
    %33 = vector.shape_cast %32 : vector<1x32x96xf32> to vector<32x96xf32>
    %cst_19 = arith.constant dense<0.000000e+00> : vector<16x96xf32>
    %34 = tpu.matmul %30, %33, %cst_19 {dimension_numbers = #tpu.dot_dimension_numbers<[1], [0], [0], [1], [0, 0, 1, 1], [], []>} : vector<16x32xf32>, vector<32x96xf32>, vector<16x96xf32> -> vector<16x96xf32>
    %35 = arith.index_cast %arg1 : i32 to index
    %c0_20 = arith.constant 0 : index
    %c0_21 = arith.constant 0 : index
    %36 = vector.load %arg6[%35, %c0_20, %c0_21] : memref<3x1x96xf32, #tpu.memory_space<vmem>>, vector<1x1x96xf32>
    %37 = vector.shape_cast %36 : vector<1x1x96xf32> to vector<1x96xf32>
    %38 = vector.broadcast %37 : vector<1x96xf32> to vector<16x96xf32>
    %39 = arith.addf %34, %38 : vector<16x96xf32>
    %c0_22 = arith.constant 0 : index
    %c0_23 = arith.constant 0 : index
    %c0_24 = arith.constant 0 : index
    %40 = vector.load %arg3[%c0_22, %c0_23, %c0_24] : memref<1x16x16xf32, #tpu.memory_space<vmem>>, vector<1x16x16xf32>
    %41 = vector.shape_cast %40 : vector<1x16x16xf32> to vector<16x16xf32>
    %42 = vector.extract_strided_slice %39 {offsets = [0, 0], sizes = [16, 16], strides = [1, 1]} : vector<16x96xf32> to vector<16x16xf32>
    %cst_25 = arith.constant 2.500000e-01 : f32
    %43 = vector.broadcast %cst_25 : f32 to vector<16x16xf32>
    %44 = arith.mulf %42, %43 : vector<16x16xf32>
    %45 = vector.extract_strided_slice %39 {offsets = [0, 32], sizes = [16, 16], strides = [1, 1]} : vector<16x96xf32> to vector<16x16xf32>
    %46 = vector.extract_strided_slice %39 {offsets = [0, 64], sizes = [16, 16], strides = [1, 1]} : vector<16x96xf32> to vector<16x16xf32>
    %cst_26 = arith.constant dense<0.000000e+00> : vector<16x16xf32>
    %47 = tpu.matmul %44, %45, %cst_26 {dimension_numbers = #tpu.dot_dimension_numbers<[1], [1], [0], [0], [0, 0, 1, 0], [], []>} : vector<16x16xf32>, vector<16x16xf32>, vector<16x16xf32> -> vector<16x16xf32>
    %48 = arith.addf %47, %41 : vector<16x16xf32>
    %cst_27 = arith.constant dense<0xFF800000> : vector<16xf32>
    %49 = vector.multi_reduction <maximumf>, %48, %cst_27 [1] : vector<16x16xf32> to vector<16xf32>
    %50 = vector.shape_cast %49 : vector<16xf32> to vector<16x1xf32>
    %51 = vector.broadcast %50 : vector<16x1xf32> to vector<16x16xf32>
    %52 = arith.subf %48, %51 : vector<16x16xf32>
    %53 = math.exp %52 : vector<16x16xf32>
    %cst_28 = arith.constant dense<0.000000e+00> : vector<16xf32>
    %54 = vector.multi_reduction <add>, %53, %cst_28 [1] : vector<16x16xf32> to vector<16xf32>
    %55 = vector.shape_cast %54 : vector<16xf32> to vector<16x1xf32>
    %56 = tpu.reciprocal %55 {approx = true} : vector<16x1xf32> -> vector<16x1xf32>
    %57 = vector.broadcast %56 : vector<16x1xf32> to vector<16x16xf32>
    %58 = arith.mulf %53, %57 : vector<16x16xf32>
    %cst_29 = arith.constant dense<0.000000e+00> : vector<16x16xf32>
    %59 = tpu.matmul %58, %46, %cst_29 {dimension_numbers = #tpu.dot_dimension_numbers<[1], [0], [0], [1], [0, 0, 1, 1], [], []>} : vector<16x16xf32>, vector<16x16xf32>, vector<16x16xf32> -> vector<16x16xf32>
    %60 = vector.extract_strided_slice %39 {offsets = [0, 16], sizes = [16, 16], strides = [1, 1]} : vector<16x96xf32> to vector<16x16xf32>
    %cst_30 = arith.constant 2.500000e-01 : f32
    %61 = vector.broadcast %cst_30 : f32 to vector<16x16xf32>
    %62 = arith.mulf %60, %61 : vector<16x16xf32>
    %63 = vector.extract_strided_slice %39 {offsets = [0, 48], sizes = [16, 16], strides = [1, 1]} : vector<16x96xf32> to vector<16x16xf32>
    %64 = vector.extract_strided_slice %39 {offsets = [0, 80], sizes = [16, 16], strides = [1, 1]} : vector<16x96xf32> to vector<16x16xf32>
    %cst_31 = arith.constant dense<0.000000e+00> : vector<16x16xf32>
    %65 = tpu.matmul %62, %63, %cst_31 {dimension_numbers = #tpu.dot_dimension_numbers<[1], [1], [0], [0], [0, 0, 1, 0], [], []>} : vector<16x16xf32>, vector<16x16xf32>, vector<16x16xf32> -> vector<16x16xf32>
    %66 = arith.addf %65, %41 : vector<16x16xf32>
    %cst_32 = arith.constant dense<0xFF800000> : vector<16xf32>
    %67 = vector.multi_reduction <maximumf>, %66, %cst_32 [1] : vector<16x16xf32> to vector<16xf32>
    %68 = vector.shape_cast %67 : vector<16xf32> to vector<16x1xf32>
    %69 = vector.broadcast %68 : vector<16x1xf32> to vector<16x16xf32>
    %70 = arith.subf %66, %69 : vector<16x16xf32>
    %71 = math.exp %70 : vector<16x16xf32>
    %cst_33 = arith.constant dense<0.000000e+00> : vector<16xf32>
    %72 = vector.multi_reduction <add>, %71, %cst_33 [1] : vector<16x16xf32> to vector<16xf32>
    %73 = vector.shape_cast %72 : vector<16xf32> to vector<16x1xf32>
    %74 = tpu.reciprocal %73 {approx = true} : vector<16x1xf32> -> vector<16x1xf32>
    %75 = vector.broadcast %74 : vector<16x1xf32> to vector<16x16xf32>
    %76 = arith.mulf %71, %75 : vector<16x16xf32>
    %cst_34 = arith.constant dense<0.000000e+00> : vector<16x16xf32>
    %77 = tpu.matmul %76, %64, %cst_34 {dimension_numbers = #tpu.dot_dimension_numbers<[1], [0], [0], [1], [0, 0, 1, 1], [], []>} : vector<16x16xf32>, vector<16x16xf32>, vector<16x16xf32> -> vector<16x16xf32>
    %78 = tpu.concatenate %59, %77 in 1 : vector<16x16xf32>, vector<16x16xf32> -> vector<16x32xf32>
    %79 = arith.index_cast %arg1 : i32 to index
    %c0_35 = arith.constant 0 : index
    %c0_36 = arith.constant 0 : index
    %80 = vector.load %arg11[%79, %c0_35, %c0_36] : memref<3x6x32xf32, #tpu.memory_space<vmem>>, vector<1x6x32xf32>
    %81 = vector.shape_cast %80 : vector<1x6x32xf32> to vector<6x32xf32>
    %82 = arith.index_cast %arg1 : i32 to index
    %c0_37 = arith.constant 0 : index
    %c0_38 = arith.constant 0 : index
    %83 = vector.load %arg7[%82, %c0_37, %c0_38] : memref<3x32x32xf32, #tpu.memory_space<vmem>>, vector<1x32x32xf32>
    %84 = vector.shape_cast %83 : vector<1x32x32xf32> to vector<32x32xf32>
    %cst_39 = arith.constant dense<0.000000e+00> : vector<16x32xf32>
    %85 = tpu.matmul %78, %84, %cst_39 {dimension_numbers = #tpu.dot_dimension_numbers<[1], [0], [0], [1], [0, 0, 1, 1], [], []>} : vector<16x32xf32>, vector<32x32xf32>, vector<16x32xf32> -> vector<16x32xf32>
    %86 = vector.extract_strided_slice %81 {offsets = [0, 0], sizes = [1, 32], strides = [1, 1]} : vector<6x32xf32> to vector<1x32xf32>
    %87 = vector.broadcast %86 : vector<1x32xf32> to vector<16x32xf32>
    %88 = arith.addf %85, %87 : vector<16x32xf32>
    %89 = arith.addf %30, %88 : vector<16x32xf32>
    %90 = vector.extract_strided_slice %81 {offsets = [1, 0], sizes = [1, 32], strides = [1, 1]} : vector<6x32xf32> to vector<1x32xf32>
    %91 = vector.extract_strided_slice %81 {offsets = [2, 0], sizes = [1, 32], strides = [1, 1]} : vector<6x32xf32> to vector<1x32xf32>
    %cst_40 = arith.constant dense<0.000000e+00> : vector<16xf32>
    %92 = vector.multi_reduction <add>, %89, %cst_40 [1] : vector<16x32xf32> to vector<16xf32>
    %93 = vector.shape_cast %92 : vector<16xf32> to vector<16x1xf32>
    %cst_41 = arith.constant 3.200000e+01 : f32
    %94 = vector.broadcast %cst_41 : f32 to vector<16x1xf32>
    %95 = arith.divf %93, %94 : vector<16x1xf32>
    %96 = vector.broadcast %95 : vector<16x1xf32> to vector<16x32xf32>
    %97 = arith.subf %89, %96 : vector<16x32xf32>
    %98 = arith.mulf %97, %97 : vector<16x32xf32>
    %cst_42 = arith.constant dense<0.000000e+00> : vector<16xf32>
    %99 = vector.multi_reduction <add>, %98, %cst_42 [1] : vector<16x32xf32> to vector<16xf32>
    %100 = vector.shape_cast %99 : vector<16xf32> to vector<16x1xf32>
    %cst_43 = arith.constant 3.200000e+01 : f32
    %101 = vector.broadcast %cst_43 : f32 to vector<16x1xf32>
    %102 = arith.divf %100, %101 : vector<16x1xf32>
    %103 = vector.broadcast %95 : vector<16x1xf32> to vector<16x32xf32>
    %104 = arith.subf %89, %103 : vector<16x32xf32>
    %cst_44 = arith.constant 9.99999996E-13 : f32
    %105 = vector.broadcast %cst_44 : f32 to vector<16x1xf32>
    %106 = arith.addf %102, %105 : vector<16x1xf32>
    %107 = math.rsqrt %106 : vector<16x1xf32>
    %108 = vector.broadcast %107 : vector<16x1xf32> to vector<16x32xf32>
    %109 = arith.mulf %104, %108 : vector<16x32xf32>
    %110 = vector.broadcast %90 : vector<1x32xf32> to vector<16x32xf32>
    %111 = arith.mulf %109, %110 : vector<16x32xf32>
    %112 = vector.broadcast %91 : vector<1x32xf32> to vector<16x32xf32>
    %113 = arith.addf %111, %112 : vector<16x32xf32>
    %114 = arith.index_cast %arg1 : i32 to index
    %c0_45 = arith.constant 0 : index
    %c0_46 = arith.constant 0 : index
    %115 = vector.load %arg8[%114, %c0_45, %c0_46] : memref<3x32x64xf32, #tpu.memory_space<vmem>>, vector<1x32x64xf32>
    %116 = vector.shape_cast %115 : vector<1x32x64xf32> to vector<32x64xf32>
    %cst_47 = arith.constant dense<0.000000e+00> : vector<16x64xf32>
    %117 = tpu.matmul %113, %116, %cst_47 {dimension_numbers = #tpu.dot_dimension_numbers<[1], [0], [0], [1], [0, 0, 1, 1], [], []>} : vector<16x32xf32>, vector<32x64xf32>, vector<16x64xf32> -> vector<16x64xf32>
    %118 = arith.index_cast %arg1 : i32 to index
    %c0_48 = arith.constant 0 : index
    %c0_49 = arith.constant 0 : index
    %119 = vector.load %arg9[%118, %c0_48, %c0_49] : memref<3x1x64xf32, #tpu.memory_space<vmem>>, vector<1x1x64xf32>
    %120 = vector.shape_cast %119 : vector<1x1x64xf32> to vector<1x64xf32>
    %121 = vector.broadcast %120 : vector<1x64xf32> to vector<16x64xf32>
    %122 = arith.addf %117, %121 : vector<16x64xf32>
    %cst_50 = arith.constant 5.000000e-01 : f32
    %123 = vector.broadcast %cst_50 : f32 to vector<16x64xf32>
    %124 = arith.mulf %123, %122 : vector<16x64xf32>
    %cst_51 = arith.constant 4.471500e-02 : f32
    %125 = vector.broadcast %cst_51 : f32 to vector<16x64xf32>
    %126 = arith.mulf %125, %122 : vector<16x64xf32>
    %127 = arith.mulf %126, %122 : vector<16x64xf32>
    %128 = arith.mulf %127, %122 : vector<16x64xf32>
    %129 = arith.addf %122, %128 : vector<16x64xf32>
    %cst_52 = arith.constant 0.797884583 : f32
    %130 = vector.broadcast %cst_52 : f32 to vector<16x64xf32>
    %131 = arith.mulf %130, %129 : vector<16x64xf32>
    %132 = math.tanh %131 : vector<16x64xf32>
    %cst_53 = arith.constant 1.000000e+00 : f32
    %133 = vector.broadcast %cst_53 : f32 to vector<16x64xf32>
    %134 = arith.addf %133, %132 : vector<16x64xf32>
    %135 = arith.mulf %124, %134 : vector<16x64xf32>
    %136 = arith.index_cast %arg1 : i32 to index
    %c0_54 = arith.constant 0 : index
    %c0_55 = arith.constant 0 : index
    %137 = vector.load %arg10[%136, %c0_54, %c0_55] : memref<3x64x32xf32, #tpu.memory_space<vmem>>, vector<1x64x32xf32>
    %138 = vector.shape_cast %137 : vector<1x64x32xf32> to vector<64x32xf32>
    %cst_56 = arith.constant dense<0.000000e+00> : vector<16x32xf32>
    %139 = tpu.matmul %135, %138, %cst_56 {dimension_numbers = #tpu.dot_dimension_numbers<[1], [0], [0], [1], [0, 0, 1, 1], [], []>} : vector<16x64xf32>, vector<64x32xf32>, vector<16x32xf32> -> vector<16x32xf32>
    %140 = vector.extract_strided_slice %81 {offsets = [3, 0], sizes = [1, 32], strides = [1, 1]} : vector<6x32xf32> to vector<1x32xf32>
    %141 = vector.broadcast %140 : vector<1x32xf32> to vector<16x32xf32>
    %142 = arith.addf %139, %141 : vector<16x32xf32>
    %143 = arith.addf %113, %142 : vector<16x32xf32>
    %144 = vector.extract_strided_slice %81 {offsets = [4, 0], sizes = [1, 32], strides = [1, 1]} : vector<6x32xf32> to vector<1x32xf32>
    %145 = vector.extract_strided_slice %81 {offsets = [5, 0], sizes = [1, 32], strides = [1, 1]} : vector<6x32xf32> to vector<1x32xf32>
    %cst_57 = arith.constant dense<0.000000e+00> : vector<16xf32>
    %146 = vector.multi_reduction <add>, %143, %cst_57 [1] : vector<16x32xf32> to vector<16xf32>
    %147 = vector.shape_cast %146 : vector<16xf32> to vector<16x1xf32>
    %cst_58 = arith.constant 3.200000e+01 : f32
    %148 = vector.broadcast %cst_58 : f32 to vector<16x1xf32>
    %149 = arith.divf %147, %148 : vector<16x1xf32>
    %150 = vector.broadcast %149 : vector<16x1xf32> to vector<16x32xf32>
    %151 = arith.subf %143, %150 : vector<16x32xf32>
    %152 = arith.mulf %151, %151 : vector<16x32xf32>
    %cst_59 = arith.constant dense<0.000000e+00> : vector<16xf32>
    %153 = vector.multi_reduction <add>, %152, %cst_59 [1] : vector<16x32xf32> to vector<16xf32>
    %154 = vector.shape_cast %153 : vector<16xf32> to vector<16x1xf32>
    %cst_60 = arith.constant 3.200000e+01 : f32
    %155 = vector.broadcast %cst_60 : f32 to vector<16x1xf32>
    %156 = arith.divf %154, %155 : vector<16x1xf32>
    %157 = vector.broadcast %149 : vector<16x1xf32> to vector<16x32xf32>
    %158 = arith.subf %143, %157 : vector<16x32xf32>
    %cst_61 = arith.constant 9.99999996E-13 : f32
    %159 = vector.broadcast %cst_61 : f32 to vector<16x1xf32>
    %160 = arith.addf %156, %159 : vector<16x1xf32>
    %161 = math.rsqrt %160 : vector<16x1xf32>
    %162 = vector.broadcast %161 : vector<16x1xf32> to vector<16x32xf32>
    %163 = arith.mulf %158, %162 : vector<16x32xf32>
    %164 = vector.broadcast %144 : vector<1x32xf32> to vector<16x32xf32>
    %165 = arith.mulf %163, %164 : vector<16x32xf32>
    %166 = vector.broadcast %145 : vector<1x32xf32> to vector<16x32xf32>
    %167 = arith.addf %165, %166 : vector<16x32xf32>
    %c0_62 = arith.constant 0 : index
    %c0_63 = arith.constant 0 : index
    %168 = vector.load %arg14[%c0_62, %c0_63] : memref<16x32xf32, #tpu.memory_space<vmem>>, vector<16x32xf32>
    tpu.vector_store %arg14[%c0_62, %c0_63], %167 {strides = array<i32>} : memref<16x32xf32, #tpu.memory_space<vmem>>, vector<16x32xf32>,
    return
  }
  func.func @transform_0(%arg0: i32, %arg1: i32) -> (i32, i32) {
    %c0_i32 = arith.constant 0 : i32
    %c0_i32_0 = arith.constant 0 : i32
    return %arg0, %c0_i32 : i32, i32
  }
  func.func @transform_1(%arg0: i32, %arg1: i32) -> (i32, i32, i32) {
    %c0_i32 = arith.constant 0 : i32
    %c0_i32_0 = arith.constant 0 : i32
    %c0_i32_1 = arith.constant 0 : i32
    return %arg0, %c0_i32, %c0_i32_0 : i32, i32, i32
  }
  func.func @transform_2(%arg0: i32, %arg1: i32) -> (i32, i32) {
    %c0_i32 = arith.constant 0 : i32
    %c0_i32_0 = arith.constant 0 : i32
    %c0_i32_1 = arith.constant 0 : i32
    return %c0_i32, %c0_i32_0 : i32, i32
  }
  func.func @transform_3(%arg0: i32, %arg1: i32) -> (i32, i32, i32) {
    %c0_i32 = arith.constant 0 : i32
    %c0_i32_0 = arith.constant 0 : i32
    %c0_i32_1 = arith.constant 0 : i32
    %c0_i32_2 = arith.constant 0 : i32
    return %c0_i32, %c0_i32_0, %c0_i32_1 : i32, i32, i32
  }
  func.func @transform_4(%arg0: i32, %arg1: i32) -> (i32, i32, i32) {
    %c0_i32 = arith.constant 0 : i32
    %c0_i32_0 = arith.constant 0 : i32
    %c0_i32_1 = arith.constant 0 : i32
    %c0_i32_2 = arith.constant 0 : i32
    return %c0_i32, %c0_i32_0, %c0_i32_1 : i32, i32, i32
  }
  func.func @transform_5(%arg0: i32, %arg1: i32) -> (i32, i32, i32) {
    %c0_i32 = arith.constant 0 : i32
    %c0_i32_0 = arith.constant 0 : i32
    %c0_i32_1 = arith.constant 0 : i32
    %c0_i32_2 = arith.constant 0 : i32
    return %c0_i32, %c0_i32_0, %c0_i32_1 : i32, i32, i32
  }
  func.func @transform_6(%arg0: i32, %arg1: i32) -> (i32, i32, i32) {
    %c0_i32 = arith.constant 0 : i32
    %c0_i32_0 = arith.constant 0 : i32
    %c0_i32_1 = arith.constant 0 : i32
    %c0_i32_2 = arith.constant 0 : i32
    return %c0_i32, %c0_i32_0, %c0_i32_1 : i32, i32, i32
  }
  func.func @transform_7(%arg0: i32, %arg1: i32) -> (i32, i32, i32) {
    %c0_i32 = arith.constant 0 : i32
    %c0_i32_0 = arith.constant 0 : i32
    %c0_i32_1 = arith.constant 0 : i32
    %c0_i32_2 = arith.constant 0 : i32
    return %c0_i32, %c0_i32_0, %c0_i32_1 : i32, i32, i32
  }
  func.func @transform_8(%arg0: i32, %arg1: i32) -> (i32, i32, i32) {
    %c0_i32 = arith.constant 0 : i32
    %c0_i32_0 = arith.constant 0 : i32
    %c0_i32_1 = arith.constant 0 : i32
    %c0_i32_2 = arith.constant 0 : i32
    return %c0_i32, %c0_i32_0, %c0_i32_1 : i32, i32, i32
  }
  func.func @transform_9(%arg0: i32, %arg1: i32) -> (i32, i32, i32) {
    %c0_i32 = arith.constant 0 : i32
    %c0_i32_0 = arith.constant 0 : i32
    %c0_i32_1 = arith.constant 0 : i32
    %c0_i32_2 = arith.constant 0 : i32
    return %c0_i32, %c0_i32_0, %c0_i32_1 : i32, i32, i32
  }
  func.func @transform_10(%arg0: i32, %arg1: i32) -> (i32, i32) {
    %c0_i32 = arith.constant 0 : i32
    %c0_i32_0 = arith.constant 0 : i32
    %c0_i32_1 = arith.constant 0 : i32
    return %c0_i32, %c0_i32_0 : i32, i32
  }
  func.func @transform_11(%arg0: i32, %arg1: i32) -> (i32, i32) {
    %c0_i32 = arith.constant 0 : i32
    %c0_i32_0 = arith.constant 0 : i32
    %c0_i32_1 = arith.constant 0 : i32
    return %c0_i32, %c0_i32_0 : i32, i32
  }
  func.func @transform_12(%arg0: i32, %arg1: i32) -> (i32, i32) {
    %c0_i32 = arith.constant 0 : i32
    %c0_i32_0 = arith.constant 0 : i32
    return %arg0, %c0_i32 : i32, i32
  }
}

</mosaic_0001>

<llo_original>
// kernel: tpu_custom_call.1
$region0: #{tpu_custom_call.1}
  #allocation0 [shape = 'u32[]', space=smem, size = 0x4, offset = 0x4, fixed_abs, tag = 'smem constant byte address 0x4 - core index']
  #allocation1 [shape = 'u32[144,128]{1,0:T(1,128)}', space=vmem, size = 0x12000, scoped, tag = 'internal scratch']
  %s0 = inlined_call_operand.hbm [shape: f32[16,32], index: 0, kind: input, shape index: {}]
  %s1 = inlined_call_operand.hbm [shape: f32[1,16,16], index: 1, kind: input, shape index: {}]
  %s2 = inlined_call_operand.vmem [shape: f32[16,1], index: 2, kind: input, shape index: {}]
  %s3 = inlined_call_operand.vmem [shape: f32[3,32,96], index: 3, kind: input, shape index: {}]
  %s4 = inlined_call_operand.hbm [shape: f32[3,1,96], index: 4, kind: input, shape index: {}]
  %s5 = inlined_call_operand.vmem [shape: f32[3,32,32], index: 5, kind: input, shape index: {}]
  %s6 = inlined_call_operand.vmem [shape: f32[3,32,64], index: 6, kind: input, shape index: {}]
  %s7 = inlined_call_operand.vmem [shape: f32[3,1,64], index: 7, kind: input, shape index: {}]
  %s8 = inlined_call_operand.vmem [shape: f32[3,64,32], index: 8, kind: input, shape index: {}]
  %s9 = inlined_call_operand.hbm [shape: f32[3,6,32], index: 9, kind: input, shape index: {}]
  %s10 = inlined_call_operand.vmem [shape: f32[32,32], index: 10, kind: input, shape index: {}]
  %s11 = inlined_call_operand.vmem [shape: f32[1,32], index: 11, kind: input, shape index: {}]
  %s12 = inlined_call_operand.hbm [shape: f32[16,32], index: 12, kind: output, shape index: {}]
  %s13 = sld [smem:[#allocation0]]
  $region97: #{tpu_custom_call.1} parent=0
    _
  %s15 = ssub.s32 1, %s13
  %s16 = scalar_select 0, %s15, %s13
  $region1: #{tpu_custom_call.1} parent=0
    #allocation2 [shape = 'u8[8192]{0}', space=vmem, size = 0x2000, scoped, tag = 'input window, operand 0, single buffered']
    #allocation3 [shape = 's32[2]{0}', space=sflag, size = 0x8, scoped, tag = 'scoped memory for tpu_custom_call.1']
    #allocation4 [shape = 's32[2]{0}', space=sflag, size = 0x8, scoped, tag = 'scoped memory for tpu_custom_call.1']
    #allocation5 [shape = 'u8[8192]{0}', space=vmem, size = 0x2000, scoped, tag = 'input window, operand 1, single buffered']
    #allocation6 [shape = 's32[1]{0}', space=sflag, size = 0x4, scoped, tag = 'scoped memory for tpu_custom_call.1']
    #allocation7 [shape = 'u8[1536]{0}', space=vmem, size = 0x800, scoped, tag = 'input window, operand 4, single buffered']
    #allocation8 [shape = 'u8[12288]{0}', space=vmem, size = 0x3000, scoped, tag = 'input window, operand 9, single buffered']
    #allocation9 [shape = 's32[1]{0}', space=sflag, size = 0x4, scoped, tag = 'scoped memory for tpu_custom_call.1']
    #allocation10 [shape = 'u8[8192]{0}', space=vmem, size = 0x2000, scoped, tag = 'output window, operand 0, single buffered']
    %17 = vsyncpa [#allocation3], 0
    %18 = vsyncpa [#allocation6], 0
    %19 = vsyncpa [#allocation9], 0
    %20 = vsyncpa [#allocation4], 0
    loop: start=0, step=1, limit=5
    $region2: #{tpu_custom_call.1} parent=1 // loop_pre_header
      _
    $region3: #{tpu_custom_call.1} parent=1 // loop_header
      %s22 = sphi 0, %s26
      %p23 = scmp.ge.s32.totalorder %s22, 5
      %s29 = sphi 0, %s41
      %s30 = sphi 0, %s37
      %s31 = sphi 0, %s29
      %s32 = sphi 0, %s30
      %s33 = sphi 0, %s31
      %s34 = sphi 0, %s32
      %s44 = sphi 0, %s46
      %s47 = sphi 0, %s44
      %s48 = sphi 0, %s47
      %s64 = sphi 0, %s48
      %s70 = sphi 0, %s72
      %s73 = sphi 0, %s70
      %s74 = sphi 0, %s73
      %s90 = sphi 0, %s74
      %s94 = sphi 0, %s94
      %s96 = sphi 0, %s94
      %s97 = sphi 0, %s96
      %s111 = sphi 0, %s97
      %s115 = sphi 0, %s115
      %s117 = sphi 0, %s115
      %s118 = sphi 0, %s117
      %s132 = sphi 0, %s118
      %s136 = sphi 0, %s136
      %s138 = sphi 0, %s136
      %s139 = sphi 0, %s138
      %s153 = sphi 0, %s139
      %s157 = sphi 0, %s157
      %s159 = sphi 0, %s157
      %s160 = sphi 0, %s159
      %s174 = sphi 0, %s160
      %s178 = sphi 0, %s178
      %s180 = sphi 0, %s178
      %s181 = sphi 0, %s180
      %s195 = sphi 0, %s181
      %s199 = sphi 0, %s199
      %s201 = sphi 0, %s199
      %s202 = sphi 0, %s201
      %s216 = sphi 0, %s202
      %s220 = sphi 0, %s220
      %s222 = sphi 0, %s220
      %s223 = sphi 0, %s222
      %s237 = sphi 0, %s223
      %s241 = sphi 0, %s241
      %s243 = sphi 0, %s241
      %s244 = sphi 0, %s243
      %s258 = sphi 0, %s244
      %s262 = sphi 0, %s262
      %s264 = sphi 0, %s262
      %s265 = sphi 0, %s264
      %s279 = sphi 0, %s265
      %s283 = sphi 0, %s283
      %s285 = sphi 0, %s283
      %s286 = sphi 0, %s285
      %s300 = sphi 0, %s286
      %s306 = sphi 0, %s308
      %s309 = sphi 0, %s306
      %s310 = sphi 0, %s309
      %s326 = sphi 0, %s310
    $region4: #{tpu_custom_call.1} parent=1 // loop_header_branch
      %25 = sbr.rel (%p23) target = $region8
    $region5: #{tpu_custom_call.1} parent=1 // loop_body
      %s27 = ssub.s32 %s22, 1
      %s28 = ssub.s32 %s22, 2
      %s35 = sadd.s32 1, %s30
      %p36 = scmp.ge.s32.totalorder %s35, 3
      %s37 = scalar_select %p36, 0, %s35
      %s38 = sadd.s32 1, %s29
      %s39 = scalar_select %p36, %s38, %s29
      %p40 = scmp.ge.s32.totalorder %s39, 1
      %s41 = scalar_select %p40, 0, %s39
      %s42 = ssub.s32 %s29, %s41
      %p43 = scmp.eq.s32.totalorder %s42, 0
      %s45 = sadd.s32 %s44, 1
      %s46 = scalar_select %p43, %s44, %s45
      %p49 = pneg %p43
      %p50 = scmp.eq.s32.totalorder %s22, 2
      %p51 = por %p49, %p50
      %p52 = scmp.ne.s32.totalorder %s44, %s47
      %p53 = scmp.eq.s32.totalorder %s22, 0
      %p54 = por %p52, %p53
      %p55 = scmp.ne.s32.totalorder %s44, %s47
      %p56 = scmp.eq.s32.totalorder %s27, 2
      %p57 = por %p55, %p56
      %p58 = scmp.ne.s32.totalorder %s47, %s48
      %p59 = scmp.eq.s32.totalorder %s27, 0
      %p60 = por %p58, %p59
      %p61 = scmp.ne.s32.totalorder %s47, %s48
      %p62 = scmp.eq.s32.totalorder %s28, 2
      %p63 = por %p61, %p62
      %p65 = scmp.ne.s32.totalorder %s48, %s64
      %p66 = scmp.eq.s32.totalorder %s28, 0
      %p67 = por %p65, %p66
      %s68 = ssub.s32 %s29, %s41
      %p69 = scmp.eq.s32.totalorder %s68, 0
      %s71 = sadd.s32 %s70, 1
      %s72 = scalar_select %p69, %s70, %s71
      %p75 = pneg %p69
      %p76 = scmp.eq.s32.totalorder %s22, 2
      %p77 = por %p75, %p76
      %p78 = scmp.ne.s32.totalorder %s70, %s73
      %p79 = scmp.eq.s32.totalorder %s22, 0
      %p80 = por %p78, %p79
      %p81 = scmp.ne.s32.totalorder %s70, %s73
      %p82 = scmp.eq.s32.totalorder %s27, 2
      %p83 = por %p81, %p82
      %p84 = scmp.ne.s32.totalorder %s73, %s74
      %p85 = scmp.eq.s32.totalorder %s27, 0
      %p86 = por %p84, %p85
      %p87 = scmp.ne.s32.totalorder %s73, %s74
      %p88 = scmp.eq.s32.totalorder %s28, 2
      %p89 = por %p87, %p88
      %p91 = scmp.ne.s32.totalorder %s74, %s90
      %p92 = scmp.eq.s32.totalorder %s28, 0
      %p93 = por %p91, %p92
      %s95 = sadd.s32 %s94, 1
      %p98 = scmp.eq.s32.totalorder %s22, 2
      %p99 = scmp.ne.s32.totalorder %s94, %s96
      %p100 = scmp.eq.s32.totalorder %s22, 0
      %p101 = por %p99, %p100
      %p102 = scmp.ne.s32.totalorder %s94, %s96
      %p103 = scmp.eq.s32.totalorder %s27, 2
      %p104 = por %p102, %p103
      %p105 = scmp.ne.s32.totalorder %s96, %s97
      %p106 = scmp.eq.s32.totalorder %s27, 0
      %p107 = por %p105, %p106
      %p108 = scmp.ne.s32.totalorder %s96, %s97
      %p109 = scmp.eq.s32.totalorder %s28, 2
      %p110 = por %p108, %p109
      %p112 = scmp.ne.s32.totalorder %s97, %s111
      %p113 = scmp.eq.s32.totalorder %s28, 0
      %p114 = por %p112, %p113
      %s116 = sadd.s32 %s115, 1
      %p119 = scmp.eq.s32.totalorder %s22, 2
      %p120 = scmp.ne.s32.totalorder %s115, %s117
      %p121 = scmp.eq.s32.totalorder %s22, 0
      %p122 = por %p120, %p121
      %p123 = scmp.ne.s32.totalorder %s115, %s117
      %p124 = scmp.eq.s32.totalorder %s27, 2
      %p125 = por %p123, %p124
      %p126 = scmp.ne.s32.totalorder %s117, %s118
      %p127 = scmp.eq.s32.totalorder %s27, 0
      %p128 = por %p126, %p127
      %p129 = scmp.ne.s32.totalorder %s117, %s118
      %p130 = scmp.eq.s32.totalorder %s28, 2
      %p131 = por %p129, %p130
      %p133 = scmp.ne.s32.totalorder %s118, %s132
      %p134 = scmp.eq.s32.totalorder %s28, 0
      %p135 = por %p133, %p134
      %s137 = sadd.s32 %s136, 1
      %p140 = scmp.eq.s32.totalorder %s22, 2
      %p141 = scmp.ne.s32.totalorder %s136, %s138
      %p142 = scmp.eq.s32.totalorder %s22, 0
      %p143 = por %p141, %p142
      %p144 = scmp.ne.s32.totalorder %s136, %s138
      %p145 = scmp.eq.s32.totalorder %s27, 2
      %p146 = por %p144, %p145
      %p147 = scmp.ne.s32.totalorder %s138, %s139
      %p148 = scmp.eq.s32.totalorder %s27, 0
      %p149 = por %p147, %p148
      %p150 = scmp.ne.s32.totalorder %s138, %s139
      %p151 = scmp.eq.s32.totalorder %s28, 2
      %p152 = por %p150, %p151
      %p154 = scmp.ne.s32.totalorder %s139, %s153
      %p155 = scmp.eq.s32.totalorder %s28, 0
      %p156 = por %p154, %p155
      %s158 = sadd.s32 %s157, 1
      %p161 = scmp.eq.s32.totalorder %s22, 2
      %p162 = scmp.ne.s32.totalorder %s157, %s159
      %p163 = scmp.eq.s32.totalorder %s22, 0
      %p164 = por %p162, %p163
      %p165 = scmp.ne.s32.totalorder %s157, %s159
      %p166 = scmp.eq.s32.totalorder %s27, 2
      %p167 = por %p165, %p166
      %p168 = scmp.ne.s32.totalorder %s159, %s160
      %p169 = scmp.eq.s32.totalorder %s27, 0
      %p170 = por %p168, %p169
      %p171 = scmp.ne.s32.totalorder %s159, %s160
      %p172 = scmp.eq.s32.totalorder %s28, 2
      %p173 = por %p171, %p172
      %p175 = scmp.ne.s32.totalorder %s160, %s174
      %p176 = scmp.eq.s32.totalorder %s28, 0
      %p177 = por %p175, %p176
      %s179 = sadd.s32 %s178, 1
      %p182 = scmp.eq.s32.totalorder %s22, 2
      %p183 = scmp.ne.s32.totalorder %s178, %s180
      %p184 = scmp.eq.s32.totalorder %s22, 0
      %p185 = por %p183, %p184
      %p186 = scmp.ne.s32.totalorder %s178, %s180
      %p187 = scmp.eq.s32.totalorder %s27, 2
      %p188 = por %p186, %p187
      %p189 = scmp.ne.s32.totalorder %s180, %s181
      %p190 = scmp.eq.s32.totalorder %s27, 0
      %p191 = por %p189, %p190
      %p192 = scmp.ne.s32.totalorder %s180, %s181
      %p193 = scmp.eq.s32.totalorder %s28, 2
      %p194 = por %p192, %p193
      %p196 = scmp.ne.s32.totalorder %s181, %s195
      %p197 = scmp.eq.s32.totalorder %s28, 0
      %p198 = por %p196, %p197
      %s200 = sadd.s32 %s199, 1
      %p203 = scmp.eq.s32.totalorder %s22, 2
      %p204 = scmp.ne.s32.totalorder %s199, %s201
      %p205 = scmp.eq.s32.totalorder %s22, 0
      %p206 = por %p204, %p205
      %p207 = scmp.ne.s32.totalorder %s199, %s201
      %p208 = scmp.eq.s32.totalorder %s27, 2
      %p209 = por %p207, %p208
      %p210 = scmp.ne.s32.totalorder %s201, %s202
      %p211 = scmp.eq.s32.totalorder %s27, 0
      %p212 = por %p210, %p211
      %p213 = scmp.ne.s32.totalorder %s201, %s202
      %p214 = scmp.eq.s32.totalorder %s28, 2
      %p215 = por %p213, %p214
      %p217 = scmp.ne.s32.totalorder %s202, %s216
      %p218 = scmp.eq.s32.totalorder %s28, 0
      %p219 = por %p217, %p218
      %s221 = sadd.s32 %s220, 1
      %p224 = scmp.eq.s32.totalorder %s22, 2
      %p225 = scmp.ne.s32.totalorder %s220, %s222
      %p226 = scmp.eq.s32.totalorder %s22, 0
      %p227 = por %p225, %p226
      %p228 = scmp.ne.s32.totalorder %s220, %s222
      %p229 = scmp.eq.s32.totalorder %s27, 2
      %p230 = por %p228, %p229
      %p231 = scmp.ne.s32.totalorder %s222, %s223
      %p232 = scmp.eq.s32.totalorder %s27, 0
      %p233 = por %p231, %p232
      %p234 = scmp.ne.s32.totalorder %s222, %s223
      %p235 = scmp.eq.s32.totalorder %s28, 2
      %p236 = por %p234, %p235
      %p238 = scmp.ne.s32.totalorder %s223, %s237
      %p239 = scmp.eq.s32.totalorder %s28, 0
      %p240 = por %p238, %p239
      %s242 = sadd.s32 %s241, 1
      %p245 = scmp.eq.s32.totalorder %s22, 2
      %p246 = scmp.ne.s32.totalorder %s241, %s243
      %p247 = scmp.eq.s32.totalorder %s22, 0
      %p248 = por %p246, %p247
      %p249 = scmp.ne.s32.totalorder %s241, %s243
      %p250 = scmp.eq.s32.totalorder %s27, 2
      %p251 = por %p249, %p250
      %p252 = scmp.ne.s32.totalorder %s243, %s244
      %p253 = scmp.eq.s32.totalorder %s27, 0
      %p254 = por %p252, %p253
      %p255 = scmp.ne.s32.totalorder %s243, %s244
      %p256 = scmp.eq.s32.totalorder %s28, 2
      %p257 = por %p255, %p256
      %p259 = scmp.ne.s32.totalorder %s244, %s258
      %p260 = scmp.eq.s32.totalorder %s28, 0
      %p261 = por %p259, %p260
      %s263 = sadd.s32 %s262, 1
      %p266 = scmp.eq.s32.totalorder %s22, 2
      %p267 = scmp.ne.s32.totalorder %s262, %s264
      %p268 = scmp.eq.s32.totalorder %s22, 0
      %p269 = por %p267, %p268
      %p270 = scmp.ne.s32.totalorder %s262, %s264
      %p271 = scmp.eq.s32.totalorder %s27, 2
      %p272 = por %p270, %p271
      %p273 = scmp.ne.s32.totalorder %s264, %s265
      %p274 = scmp.eq.s32.totalorder %s27, 0
      %p275 = por %p273, %p274
      %p276 = scmp.ne.s32.totalorder %s264, %s265
      %p277 = scmp.eq.s32.totalorder %s28, 2
      %p278 = por %p276, %p277
      %p280 = scmp.ne.s32.totalorder %s265, %s279
      %p281 = scmp.eq.s32.totalorder %s28, 0
      %p282 = por %p280, %p281
      %s284 = sadd.s32 %s283, 1
      %p287 = scmp.eq.s32.totalorder %s22, 2
      %p288 = scmp.ne.s32.totalorder %s283, %s285
      %p289 = scmp.eq.s32.totalorder %s22, 0
      %p290 = por %p288, %p289
      %p291 = scmp.ne.s32.totalorder %s283, %s285
      %p292 = scmp.eq.s32.totalorder %s27, 2
      %p293 = por %p291, %p292
      %p294 = scmp.ne.s32.totalorder %s285, %s286
      %p295 = scmp.eq.s32.totalorder %s27, 0
      %p296 = por %p294, %p295
      %p297 = scmp.ne.s32.totalorder %s285, %s286
      %p298 = scmp.eq.s32.totalorder %s28, 2
      %p299 = por %p297, %p298
      %p301 = scmp.ne.s32.totalorder %s286, %s300
      %p302 = scmp.eq.s32.totalorder %s28, 0
      %p303 = por %p301, %p302
      %s304 = ssub.s32 %s29, %s41
      %p305 = scmp.eq.s32.totalorder %s304, 0
      %s307 = sadd.s32 %s306, 1
      %s308 = scalar_select %p305, %s306, %s307
      %p311 = pneg %p305
      %p312 = scmp.eq.s32.totalorder %s22, 2
      %p313 = por %p311, %p312
      %p314 = scmp.ne.s32.totalorder %s306, %s309
      %p315 = scmp.eq.s32.totalorder %s22, 0
      %p316 = por %p314, %p315
      %p317 = scmp.ne.s32.totalorder %s306, %s309
      %p318 = scmp.eq.s32.totalorder %s27, 2
      %p319 = por %p317, %p318
      %p320 = scmp.ne.s32.totalorder %s309, %s310
      %p321 = scmp.eq.s32.totalorder %s27, 0
      %p322 = por %p320, %p321
      %p323 = scmp.ne.s32.totalorder %s309, %s310
      %p324 = scmp.eq.s32.totalorder %s28, 2
      %p325 = por %p323, %p324
      %p327 = scmp.ne.s32.totalorder %s310, %s326
      %p328 = scmp.eq.s32.totalorder %s28, 0
      %p329 = por %p327, %p328
      %p330 = scmp.le.s32.totalorder 1, %s22
      %p331 = scmp.lt.s32.totalorder %s22, 4
      %p332 = pnand %p330, %p331
      %p333 = pneg %p332
      // Predicated region
      $region9: #{tpu_custom_call.1} parent=5 // pred_check
        _
      $region10: #{tpu_custom_call.1} parent=5 // pred_check_branch
        %335 = sbr.rel (%p332) target = $region12
      $region11: #{tpu_custom_call.1} parent=5 // pred_region
        %s336 = ssub.s32 %s22, 1
        // Predicated region
        $region13: #{tpu_custom_call.1} parent=11 // pred_check
          %p337 = pneg %p60
        $region14: #{tpu_custom_call.1} parent=11 // pred_check_branch
          %339 = sbr.rel (%p337) target = $region16
        $region15: #{tpu_custom_call.1} parent=11 // pred_region
          %s340 = smul.u32 2, %s31
          %s342 = ssub.s32 256, 256
          %343 = vsyncadd [#allocation3], %s342
          %s344 = smul.addr %s340, 128
          %s345 = scalar_lea.hbm %s0, %s344
          %s346 = sshll.u32 [#allocation2], 4
          %s347 = int_to_ptr.vmem [resolvable:$true] %s346
          %352 = dma.hbm_to_vmem [thread:$0]  %s345, 256, %s347, [#allocation3], 128, 128, 8
        $region16: #{tpu_custom_call.1} parent=11 // pred_fallthru
          _
        // Predicated region
        $region17: #{tpu_custom_call.1} parent=11 // pred_check
          %p353 = pneg %p86
        $region18: #{tpu_custom_call.1} parent=11 // pred_check_branch
          %355 = sbr.rel (%p353) target = $region20
        $region19: #{tpu_custom_call.1} parent=11 // pred_region
          %s357 = ssub.s32 256, 256
          %358 = vsyncadd [#allocation6], %s357
          %s359 = smul.addr %s31, 2
          %s360 = smul.addr %s359, 128
          %s361 = scalar_lea.hbm %s1, %s360
          %s362 = sshll.u32 [#allocation5], 4
          %s363 = int_to_ptr.vmem [resolvable:$true] %s362
          %368 = dma.hbm_to_vmem [thread:$0]  %s361, 256, %s363, [#allocation6], 128, 128, 8
        $region20: #{tpu_custom_call.1} parent=11 // pred_fallthru
          _
        // Predicated region
        $region21: #{tpu_custom_call.1} parent=11 // pred_check
          %p369 = pneg %p107
        $region22: #{tpu_custom_call.1} parent=11 // pred_check_branch
          %371 = sbr.rel (%p369) target = $region24
        $region23: #{tpu_custom_call.1} parent=11 // pred_region
          _
        $region24: #{tpu_custom_call.1} parent=11 // pred_fallthru
          _
        // Predicated region
        $region25: #{tpu_custom_call.1} parent=11 // pred_check
          %p372 = pneg %p128
        $region26: #{tpu_custom_call.1} parent=11 // pred_check_branch
          %374 = sbr.rel (%p372) target = $region28
        $region27: #{tpu_custom_call.1} parent=11 // pred_region
          _
        $region28: #{tpu_custom_call.1} parent=11 // pred_fallthru
          _
        // Predicated region
        $region29: #{tpu_custom_call.1} parent=11 // pred_check
          %p375 = pneg %p149
        $region30: #{tpu_custom_call.1} parent=11 // pred_check_branch
          %377 = sbr.rel (%p375) target = $region32
        $region31: #{tpu_custom_call.1} parent=11 // pred_region
          %s379 = ssub.s32 48, 48
          %380 = vsyncadd [#allocation6], %s379
          %s381 = sshll.u32 [#allocation7], 4
          %s382 = int_to_ptr.vmem [resolvable:$true] %s381
          %387 = dma.hbm_to_vmem [thread:$0]  %s4, 48, %s382, [#allocation6], 16, 16, 1
        $region32: #{tpu_custom_call.1} parent=11 // pred_fallthru
          _
        // Predicated region
        $region33: #{tpu_custom_call.1} parent=11 // pred_check
          %p388 = pneg %p170
        $region34: #{tpu_custom_call.1} parent=11 // pred_check_branch
          %390 = sbr.rel (%p388) target = $region36
        $region35: #{tpu_custom_call.1} parent=11 // pred_region
          _
        $region36: #{tpu_custom_call.1} parent=11 // pred_fallthru
          _
        // Predicated region
        $region37: #{tpu_custom_call.1} parent=11 // pred_check
          %p391 = pneg %p191
        $region38: #{tpu_custom_call.1} parent=11 // pred_check_branch
          %393 = sbr.rel (%p391) target = $region40
        $region39: #{tpu_custom_call.1} parent=11 // pred_region
          _
        $region40: #{tpu_custom_call.1} parent=11 // pred_fallthru
          _
        // Predicated region
        $region41: #{tpu_custom_call.1} parent=11 // pred_check
          %p394 = pneg %p212
        $region42: #{tpu_custom_call.1} parent=11 // pred_check_branch
          %396 = sbr.rel (%p394) target = $region44
        $region43: #{tpu_custom_call.1} parent=11 // pred_region
          _
        $region44: #{tpu_custom_call.1} parent=11 // pred_fallthru
          _
        // Predicated region
        $region45: #{tpu_custom_call.1} parent=11 // pred_check
          %p397 = pneg %p233
        $region46: #{tpu_custom_call.1} parent=11 // pred_check_branch
          %399 = sbr.rel (%p397) target = $region48
        $region47: #{tpu_custom_call.1} parent=11 // pred_region
          _
        $region48: #{tpu_custom_call.1} parent=11 // pred_fallthru
          _
        // Predicated region
        $region49: #{tpu_custom_call.1} parent=11 // pred_check
          %p400 = pneg %p254
        $region50: #{tpu_custom_call.1} parent=11 // pred_check_branch
          %402 = sbr.rel (%p400) target = $region52
        $region51: #{tpu_custom_call.1} parent=11 // pred_region
          %s404 = ssub.s32 384, 384
          %405 = vsyncadd [#allocation9], %s404
          %s406 = sshll.u32 [#allocation8], 4
          %s407 = int_to_ptr.vmem [resolvable:$true] %s406
          %412 = dma.hbm_to_vmem [thread:$0]  %s9, 384, %s407, [#allocation9], 128, 128, 8
        $region52: #{tpu_custom_call.1} parent=11 // pred_fallthru
          _
        // Predicated region
        $region53: #{tpu_custom_call.1} parent=11 // pred_check
          %p413 = pneg %p275
        $region54: #{tpu_custom_call.1} parent=11 // pred_check_branch
          %415 = sbr.rel (%p413) target = $region56
        $region55: #{tpu_custom_call.1} parent=11 // pred_region
          _
        $region56: #{tpu_custom_call.1} parent=11 // pred_fallthru
          _
        // Predicated region
        $region57: #{tpu_custom_call.1} parent=11 // pred_check
          %p416 = pneg %p296
        $region58: #{tpu_custom_call.1} parent=11 // pred_check_branch
          %418 = sbr.rel (%p416) target = $region60
        $region59: #{tpu_custom_call.1} parent=11 // pred_region
          _
        $region60: #{tpu_custom_call.1} parent=11 // pred_fallthru
          _
      $region12: #{tpu_custom_call.1} parent=5 // pred_fallthru
        _
      %p419 = scmp.lt.s32.totalorder %s22, 3
      // Predicated region
      $region61: #{tpu_custom_call.1} parent=5 // pred_check
        %p420 = pneg %p419
      $region62: #{tpu_custom_call.1} parent=5 // pred_check_branch
        %422 = sbr.rel (%p420) target = $region64
      $region63: #{tpu_custom_call.1} parent=5 // pred_region
        _
      $region64: #{tpu_custom_call.1} parent=5 // pred_fallthru
        _
      %p423 = scmp.le.s32.totalorder 1, %s22
      %p424 = scmp.lt.s32.totalorder %s22, 4
      %p425 = pnand %p423, %p424
      %p426 = pneg %p425
      // Predicated region
      $region65: #{tpu_custom_call.1} parent=5 // pred_check
        _
      $region66: #{tpu_custom_call.1} parent=5 // pred_check_branch
        %428 = sbr.rel (%p425) target = $region68
      $region67: #{tpu_custom_call.1} parent=5 // pred_region
        %s429 = ssub.s32 %s22, 1
        // Predicated region
        $region69: #{tpu_custom_call.1} parent=67 // pred_check
          %p430 = pneg %p60
        $region70: #{tpu_custom_call.1} parent=67 // pred_check_branch
          %432 = sbr.rel (%p430) target = $region72
        $region71: #{tpu_custom_call.1} parent=67 // pred_region
          %433 = dma.done [#allocation3], 256
        $region72: #{tpu_custom_call.1} parent=67 // pred_fallthru
          _
        // Predicated region
        $region73: #{tpu_custom_call.1} parent=67 // pred_check
          %p434 = pneg %p86
        $region74: #{tpu_custom_call.1} parent=67 // pred_check_branch
          %436 = sbr.rel (%p434) target = $region76
        $region75: #{tpu_custom_call.1} parent=67 // pred_region
          %437 = dma.done [#allocation6], 256
        $region76: #{tpu_custom_call.1} parent=67 // pred_fallthru
          _
        // Predicated region
        $region77: #{tpu_custom_call.1} parent=67 // pred_check
          %p438 = pneg %p149
        $region78: #{tpu_custom_call.1} parent=67 // pred_check_branch
          %440 = sbr.rel (%p438) target = $region80
        $region79: #{tpu_custom_call.1} parent=67 // pred_region
          %441 = dma.done [#allocation6], 48
        $region80: #{tpu_custom_call.1} parent=67 // pred_fallthru
          _
        // Predicated region
        $region81: #{tpu_custom_call.1} parent=67 // pred_check
          %p442 = pneg %p254
        $region82: #{tpu_custom_call.1} parent=67 // pred_check_branch
          %444 = sbr.rel (%p442) target = $region84
        $region83: #{tpu_custom_call.1} parent=67 // pred_region
          %445 = dma.done [#allocation9], 384
        $region84: #{tpu_custom_call.1} parent=67 // pred_fallthru
          _
        %p446 = pneg %p60
        %p447 = pneg %p57
        %p448 = pneg %p86
        %p449 = pneg %p83
        %p450 = pneg %p107
        %p451 = pneg %p104
        %p452 = pneg %p128
        %p453 = pneg %p125
        %p454 = pneg %p149
        %p455 = pneg %p146
        %p456 = pneg %p170
        %p457 = pneg %p167
        %p458 = pneg %p191
        %p459 = pneg %p188
        %p460 = pneg %p212
        %p461 = pneg %p209
        %p462 = pneg %p233
        %p463 = pneg %p230
        %p464 = pneg %p254
        %p465 = pneg %p251
        %p466 = pneg %p275
        %p467 = pneg %p272
        %p468 = pneg %p296
        %p469 = pneg %p293
        %p470 = pneg %p322
        %p471 = pneg %p319
        %s472 = smul.u32 2, %s31
        %s473 = smul.u32 2, %s31
        %p474 = scmp.eq.s32.totalorder %s32, 0
        %v475 = vld [vmem:[#allocation2] sm:$0xff]
        %v476 = vld [vmem:[#allocation2 + $0x8] sm:$0xff]
        %v477 = vld [vmem:[#allocation10] sm:$0xff]
        %v478 = vld [vmem:[#allocation10 + $0x8] sm:$0xff]
        %s479 = scalar_select %p474, 1, 0
        %v480 = vstv %s479
        %vm481 = vcmp.eq.s32.totalorder %v480, 1
        %v482 = vsel %vm481, %v475, %v477
        %v483 = vsel %vm481, %v476, %v478
        %s484 = sadd.s32 %s32, 1
        %p485 = scmp.lt.s32.totalorder %s484, 0
        %s486 = ssub.s32 0, %s484
        %s487 = scalar_select %p485, %s486, %s484
        %s488 = sand.u32 %s487, 1
        %s489 = ssub.s32 0, %s488
        %s490 = scalar_select %p485, %s489, %s488
        %p491 = scmp.ne.s32.totalorder %s490, 0
        %p492 = scmp.lt.s32.totalorder %s490, 0
        %p493 = pnand %p492, %p491
        %p494 = pneg %p493
        %s495 = sadd.s32 %s490, 2
        %s496 = scalar_select %p494, %s495, %s490
        %p497 = scmp.eq.s32.totalorder %s496, 0
        %p498 = scmp.eq.s32.totalorder %s484, 3
        %p499 = por %p497, %p498
        %s500 = scalar_select %p499, 1.0, 0.0
        %v501 = vld [vmem:[%s10] sm:$0xff]
        %v502 = vld [vmem:[%s10 + $0x8] sm:$0xff]
        %v503 = vld [vmem:[%s10 + $0x10] sm:$0xff]
        %v504 = vld [vmem:[%s10 + $0x18] sm:$0xff]
        %v505 = vld [vmem:[%s11] sm:$0x1]
        %v507 = vlaneseq
        %v508 = vshrl.u32 %v507, 7
        %v509 = vsub.s32 0, %v508
        %v510 = vrot.slane %v505, %v509
        %vm512 = vcmask 261120
        %v514 = vsel %vm512, %v482, 0
        %v517 = vsel %vm512, %v483, 0
        %519 = vmatprep.subr.mxu0 0.0
        %520 = vmatpush1.msra.mxu0 %v501
        %521 = vmatprep.subr.mxu0 0.0
        %522 = vmatpush1.msra.mxu0 %v502
        %523 = vmatprep.subr.mxu0 0.0
        %524 = vmatpush1.msra.mxu0 %v503
        %525 = vmatprep.subr.mxu0 0.0
        %526 = vmatpush1.msra.mxu0 %v504
        %527 = vmatprep.subr.mxu0 0.0
        %528 = vmatpush1.msra.mxu0 0.0
        %529 = vmatprep.subr.mxu0 0.0
        %530 = vmatpush1.msra.mxu0 0.0
        %531 = vmatprep.subr.mxu0 0.0
        %532 = vmatpush1.msra.mxu0 0.0
        %533 = vmatprep.subr.mxu0 0.0
        %534 = vmatpush1.msra.mxu0 0.0
        %535 = vmatprep.subr.mxu0 0.0
        %536 = vmatpush1.msra.mxu0 0.0
        %537 = vmatprep.subr.mxu0 0.0
        %538 = vmatpush1.msra.mxu0 0.0
        %539 = vmatprep.subr.mxu0 0.0
        %540 = vmatpush1.msra.mxu0 0.0
        %541 = vmatprep.subr.mxu0 0.0
        %542 = vmatpush1.msra.mxu0 0.0
        %543 = vmatprep.subr.mxu0 0.0
        %544 = vmatpush1.msra.mxu0 0.0
        %545 = vmatprep.subr.mxu0 0.0
        %546 = vmatpush1.msra.mxu0 0.0
        %547 = vmatprep.subr.mxu0 0.0
        %548 = vmatpush1.msra.mxu0 0.0
        %549 = vmatprep.subr.mxu0 0.0
        %550 = vmatpush1.msra.mxu0 0.0
        %551 = vmatprep.subr.mxu0 0.0
        %552 = vmatpush1.msra.mxu0 0.0
        %553 = vmatprep.subr.mxu0 0.0
        %554 = vmatpush1.msra.mxu0 0.0
        %555 = vmatprep.subr.mxu0 0.0
        %556 = vmatpush1.msra.mxu0 0.0
        %557 = vmatprep.subr.mxu0 0.0
        %558 = vmatpush1.msra.mxu0 0.0
        %559 = vmatprep.subr.mxu0 0.0
        %560 = vmatpush1.msra.mxu0 0.0
        %561 = vmatprep.subr.mxu0 0.0
        %562 = vmatpush1.msra.mxu0 0.0
        %563 = vmatprep.subr.mxu0 0.0
        %564 = vmatpush1.msra.mxu0 0.0
        %565 = vmatprep.subr.mxu0 0.0
        %566 = vmatpush1.msra.mxu0 0.0
        %567 = vmatprep.subr.mxu0 0.0
        %568 = vmatpush1.msra.mxu0 0.0
        %569 = vmatprep.subr.mxu0 0.0
        %570 = vmatpush1.msra.mxu0 0.0
        %571 = vmatprep.subr.mxu0 0.0
        %572 = vmatpush1.msra.mxu0 0.0
        %573 = vmatprep.subr.mxu0 0.0
        %574 = vmatpush1.msra.mxu0 0.0
        %575 = vmatprep.subr.mxu0 0.0
        %576 = vmatpush1.msra.mxu0 0.0
        %577 = vmatprep.subr.mxu0 0.0
        %578 = vmatpush1.msra.mxu0 0.0
        %579 = vmatprep.subr.mxu0 0.0
        %580 = vmatpush1.msra.mxu0 0.0
        %581 = vmatprep.subr.mxu0 0.0
        %582 = vmatpush1.msra.mxu0 0.0
        %583 = vmatprep.mubr.f32.mxu0 0.0
        %584 = vmatmul.mubr.f32.gmra.mrb[0].mxu0 %v514
        %v585 = vpop.f32.mrb[0].mxu0
        %v586 = vadd.f32 %v510, %v585
        %v587 = vpop.f32.mrb[0].mxu0
        %588 = vmatprep.mubr.f32.mxu0 0.0
        %589 = vmatmul.mubr.f32.gmra.mrb[0].mxu0 %v517
        %v590 = vpop.f32.mrb[0].mxu0
        %v591 = vadd.f32 %v510, %v590
        %v592 = vpop.f32.mrb[0].mxu0
        %593 = vdwg.mxu0
        %v594 = vld [vmem:[%s2] sm:$0xff]
        %v595 = vld [vmem:[%s2 + $0x8] sm:$0xff]
        %v596 = vstv %s500
        %v597 = vmul.f32 %v594, %v596
        %v598 = vmul.f32 %v595, %v596
        %v599 = vsub.f32 %v586, %v482
        %v600 = vsub.f32 %v591, %v483
        %602 = vset.pattern.permute.xlu0 0
        %603 = vperm.xlu0 %602, %v597
        %v604 = vpop.permute.xlu0 %603
        %607 = vset.pattern.permute.xlu0 0
        %608 = vperm.xlu0 %607, %v598
        %v609 = vpop.permute.xlu0 %608
        %v611 = vmul.f32 %v604, %v599
        %v612 = vmul.f32 %v609, %v600
        %v613 = vadd.f32 %v482, %v611
        %v614 = vadd.f32 %v483, %v612
        %s615 = smul.u32 %s32, 32
        %s616 = scalar_lea.vmem %s3, %s615
        %v617 = vld [vmem:[%s616] sm:$0xff]
        %v618 = vld [vmem:[%s616 + $0x8] sm:$0xff]
        %v619 = vld [vmem:[%s616 + $0x10] sm:$0xff]
        %v620 = vld [vmem:[%s616 + $0x18] sm:$0xff]
        %s621 = scalar_lea.vmem [#allocation7], %s32
        %v622 = vld [vmem:[%s621] sm:$0x1]
        %v624 = vlaneseq
        %v625 = vshrl.u32 %v624, 7
        %v626 = vsub.s32 0, %v625
        %v627 = vrot.slane %v622, %v626
        %v630 = vsel %vm512, %v613, 0
        %v633 = vsel %vm512, %v614, 0
        %635 = vmatprep.subr.mxu0 0.0
        %636 = vmatpush1.msra.mxu0 %v617
        %637 = vmatprep.subr.mxu0 0.0
        %638 = vmatpush1.msra.mxu0 %v618
        %639 = vmatprep.subr.mxu0 0.0
        %640 = vmatpush1.msra.mxu0 %v619
        %641 = vmatprep.subr.mxu0 0.0
        %642 = vmatpush1.msra.mxu0 %v620
        %643 = vmatprep.subr.mxu0 0.0
        %644 = vmatpush1.msra.mxu0 0.0
        %645 = vmatprep.subr.mxu0 0.0
        %646 = vmatpush1.msra.mxu0 0.0
        %647 = vmatprep.subr.mxu0 0.0
        %648 = vmatpush1.msra.mxu0 0.0
        %649 = vmatprep.subr.mxu0 0.0
        %650 = vmatpush1.msra.mxu0 0.0
        %651 = vmatprep.subr.mxu0 0.0
        %652 = vmatpush1.msra.mxu0 0.0
        %653 = vmatprep.subr.mxu0 0.0
        %654 = vmatpush1.msra.mxu0 0.0
        %655 = vmatprep.subr.mxu0 0.0
        %656 = vmatpush1.msra.mxu0 0.0
        %657 = vmatprep.subr.mxu0 0.0
        %658 = vmatpush1.msra.mxu0 0.0
        %659 = vmatprep.subr.mxu0 0.0
        %660 = vmatpush1.msra.mxu0 0.0
        %661 = vmatprep.subr.mxu0 0.0
        %662 = vmatpush1.msra.mxu0 0.0
        %663 = vmatprep.subr.mxu0 0.0
        %664 = vmatpush1.msra.mxu0 0.0
        %665 = vmatprep.subr.mxu0 0.0
        %666 = vmatpush1.msra.mxu0 0.0
        %667 = vmatprep.subr.mxu0 0.0
        %668 = vmatpush1.msra.mxu0 0.0
        %669 = vmatprep.subr.mxu0 0.0
        %670 = vmatpush1.msra.mxu0 0.0
        %671 = vmatprep.subr.mxu0 0.0
        %672 = vmatpush1.msra.mxu0 0.0
        %673 = vmatprep.subr.mxu0 0.0
        %674 = vmatpush1.msra.mxu0 0.0
        %675 = vmatprep.subr.mxu0 0.0
        %676 = vmatpush1.msra.mxu0 0.0
        %677 = vmatprep.subr.mxu0 0.0
        %678 = vmatpush1.msra.mxu0 0.0
        %679 = vmatprep.subr.mxu0 0.0
        %680 = vmatpush1.msra.mxu0 0.0
        %681 = vmatprep.subr.mxu0 0.0
        %682 = vmatpush1.msra.mxu0 0.0
        %683 = vmatprep.subr.mxu0 0.0
        %684 = vmatpush1.msra.mxu0 0.0
        %685 = vmatprep.subr.mxu0 0.0
        %686 = vmatpush1.msra.mxu0 0.0
        %687 = vmatprep.subr.mxu0 0.0
        %688 = vmatpush1.msra.mxu0 0.0
        %689 = vmatprep.subr.mxu0 0.0
        %690 = vmatpush1.msra.mxu0 0.0
        %691 = vmatprep.subr.mxu0 0.0
        %692 = vmatpush1.msra.mxu0 0.0
        %693 = vmatprep.subr.mxu0 0.0
        %694 = vmatpush1.msra.mxu0 0.0
        %695 = vmatprep.subr.mxu0 0.0
        %696 = vmatpush1.msra.mxu0 0.0
        %697 = vmatprep.subr.mxu0 0.0
        %698 = vmatpush1.msra.mxu0 0.0
        %699 = vmatprep.mubr.f32.mxu0 0.0
        %700 = vmatmul.mubr.f32.gmra.mrb[0].mxu0 %v630
        %v701 = vpop.f32.mrb[0].mxu0
        %v702 = vadd.f32 %v627, %v701
        %v703 = vpop.f32.mrb[0].mxu0
        %704 = vmatprep.mubr.f32.mxu0 0.0
        %705 = vmatmul.mubr.f32.gmra.mrb[0].mxu0 %v633
        %v706 = vpop.f32.mrb[0].mxu0
        %v707 = vadd.f32 %v627, %v706
        %v708 = vpop.f32.mrb[0].mxu0
        %709 = vdwg.mxu0
        %v710 = vld [vmem:[#allocation5] sm:$0xff]
        %v711 = vld [vmem:[#allocation5 + $0x8] sm:$0xff]
        %v712 = vmul.f32 %v702, 0.25
        %v713 = vmul.f32 %v707, 0.25
        %716 = vrot.lane.b32.xlu0 %v702, 96
        %v717 = vpop.permute.xlu0 %716
        %718 = vrot.lane.b32.xlu0 %v707, 96
        %v719 = vpop.permute.xlu0 %718
        %vm720 = vcmask 130048
        %v722 = vsel %vm720, %v712, 0
        %v725 = vsel %vm720, %v713, 0
        %v727 = vsel %vm720, %v717, 0
        %v729 = vsel %vm720, %v719, 0
        %731 = vmatprep.subr.mxu0 0.0
        %732 = vmatpush1.xpose.msra.mxu0 %v727
        %733 = vmatprep.subr.mxu0 0.0
        %734 = vmatpush1.xpose.msra.mxu0 %v729
        %735 = vmatprep.subr.mxu0 0.0
        %736 = vmatpush1.xpose.msra.mxu0 0.0
        %737 = vmatprep.subr.mxu0 0.0
        %738 = vmatpush1.xpose.msra.mxu0 0.0
        %739 = vmatprep.subr.mxu0 0.0
        %740 = vmatpush1.xpose.msra.mxu0 0.0
        %741 = vmatprep.subr.mxu0 0.0
        %742 = vmatpush1.xpose.msra.mxu0 0.0
        %743 = vmatprep.subr.mxu0 0.0
        %744 = vmatpush1.xpose.msra.mxu0 0.0
        %745 = vmatprep.subr.mxu0 0.0
        %746 = vmatpush1.xpose.msra.mxu0 0.0
        %747 = vmatprep.subr.mxu0 0.0
        %748 = vmatpush1.xpose.msra.mxu0 0.0
        %749 = vmatprep.subr.mxu0 0.0
        %750 = vmatpush1.xpose.msra.mxu0 0.0
        %751 = vmatprep.subr.mxu0 0.0
        %752 = vmatpush1.xpose.msra.mxu0 0.0
        %753 = vmatprep.subr.mxu0 0.0
        %754 = vmatpush1.xpose.msra.mxu0 0.0
        %755 = vmatprep.subr.mxu0 0.0
        %756 = vmatpush1.xpose.msra.mxu0 0.0
        %757 = vmatprep.subr.mxu0 0.0
        %758 = vmatpush1.xpose.msra.mxu0 0.0
        %759 = vmatprep.subr.mxu0 0.0
        %760 = vmatpush1.xpose.msra.mxu0 0.0
        %761 = vmatprep.subr.mxu0 0.0
        %762 = vmatpush1.xpose.msra.mxu0 0.0
        %763 = vmatprep.subr.mxu0 0.0
        %764 = vmatpush1.xpose.msra.mxu0 0.0
        %765 = vmatprep.subr.mxu0 0.0
        %766 = vmatpush1.xpose.msra.mxu0 0.0
        %767 = vmatprep.subr.mxu0 0.0
        %768 = vmatpush1.xpose.msra.mxu0 0.0
        %769 = vmatprep.subr.mxu0 0.0
        %770 = vmatpush1.xpose.msra.mxu0 0.0
        %771 = vmatprep.subr.mxu0 0.0
        %772 = vmatpush1.xpose.msra.mxu0 0.0
        %773 = vmatprep.subr.mxu0 0.0
        %774 = vmatpush1.xpose.msra.mxu0 0.0
        %775 = vmatprep.subr.mxu0 0.0
        %776 = vmatpush1.xpose.msra.mxu0 0.0
        %777 = vmatprep.subr.mxu0 0.0
        %778 = vmatpush1.xpose.msra.mxu0 0.0
        %779 = vmatprep.subr.mxu0 0.0
        %780 = vmatpush1.xpose.msra.mxu0 0.0
        %781 = vmatprep.subr.mxu0 0.0
        %782 = vmatpush1.xpose.msra.mxu0 0.0
        %783 = vmatprep.subr.mxu0 0.0
        %784 = vmatpush1.xpose.msra.mxu0 0.0
        %785 = vmatprep.subr.mxu0 0.0
        %786 = vmatpush1.xpose.msra.mxu0 0.0
        %787 = vmatprep.subr.mxu0 0.0
        %788 = vmatpush1.xpose.msra.mxu0 0.0
        %789 = vmatprep.subr.mxu0 0.0
        %790 = vmatpush1.xpose.msra.mxu0 0.0
        %791 = vmatprep.subr.mxu0 0.0
        %792 = vmatpush1.xpose.msra.mxu0 0.0
        %793 = vmatprep.subr.mxu0 0.0
        %794 = vmatpush1.xpose.msra.mxu0 0.0
        %795 = vmatprep.mubr.f32.mxu0 0.0
        %796 = vmatmul.mubr.f32.gmra.mrb[0].mxu0 %v722
        %v797 = vpop.f32.mrb[0].mxu0
        %v798 = vadd.f32 %v710, %v797
        %v799 = vpop.f32.mrb[0].mxu0
        %800 = vmatprep.mubr.f32.mxu0 0.0
        %801 = vmatmul.mubr.f32.gmra.mrb[0].mxu0 %v725
        %v802 = vpop.f32.mrb[0].mxu0
        %v803 = vadd.f32 %v711, %v802
        %v804 = vpop.f32.mrb[0].mxu0
        %805 = vdwg.mxu0
        %v806 = vsel %vm720, %v798, -inf
        %807 = vmax.xlane.f32.xlu0 %v806
        %v808 = vpop.xlane.xlu0 %807
        %v809 = vsel %vm720, %v803, -inf
        %810 = vmax.xlane.f32.xlu0 %v809
        %v811 = vpop.xlane.xlu0 %810
        %v812 = vsub.f32 %v798, %v808
        %v813 = vsub.f32 %v803, %v811
        %v814 = vmul.f32 %v812, 1.442695
        %v815 = vpow.pop %v814
        %v816 = vmul.f32 %v813, 1.442695
        %v817 = vpow.pop %v816
        %v818 = vsel %vm720, %v815, 0.0
        %819 = vadd.xlane.f32.xlu0 %v818
        %v820 = vpop.xlane.xlu0 %819
        %v821 = vsel %vm720, %v817, 0.0
        %822 = vadd.xlane.f32.xlu0 %v821
        %v823 = vpop.xlane.xlu0 %822
        %v824 = vrcp.pop %v820
        %v825 = vrcp.pop %v823
        %v826 = vmul.f32 %v815, %v824
        %v827 = vmul.f32 %v817, %v825
        %828 = vrot.lane.b32.xlu0 %v702, 64
        %v829 = vpop.permute.xlu0 %828
        %830 = vrot.lane.b32.xlu0 %v707, 64
        %v831 = vpop.permute.xlu0 %830
        %v835 = vsel %vm720, %v826, 0
        %v838 = vsel %vm720, %v827, 0
        %840 = vmatprep.subr.mxu0 0.0
        %841 = vmatpush1.msra.mxu0 %v829
        %842 = vmatprep.subr.mxu0 0.0
        %843 = vmatpush1.msra.mxu0 %v831
        %844 = vmatprep.subr.mxu0 0.0
        %845 = vmatpush1.msra.mxu0 0.0
        %846 = vmatprep.subr.mxu0 0.0
        %847 = vmatpush1.msra.mxu0 0.0
        %848 = vmatprep.subr.mxu0 0.0
        %849 = vmatpush1.msra.mxu0 0.0
        %850 = vmatprep.subr.mxu0 0.0
        %851 = vmatpush1.msra.mxu0 0.0
        %852 = vmatprep.subr.mxu0 0.0
        %853 = vmatpush1.msra.mxu0 0.0
        %854 = vmatprep.subr.mxu0 0.0
        %855 = vmatpush1.msra.mxu0 0.0
        %856 = vmatprep.subr.mxu0 0.0
        %857 = vmatpush1.msra.mxu0 0.0
        %858 = vmatprep.subr.mxu0 0.0
        %859 = vmatpush1.msra.mxu0 0.0
        %860 = vmatprep.subr.mxu0 0.0
        %861 = vmatpush1.msra.mxu0 0.0
        %862 = vmatprep.subr.mxu0 0.0
        %863 = vmatpush1.msra.mxu0 0.0
        %864 = vmatprep.subr.mxu0 0.0
        %865 = vmatpush1.msra.mxu0 0.0
        %866 = vmatprep.subr.mxu0 0.0
        %867 = vmatpush1.msra.mxu0 0.0
        %868 = vmatprep.subr.mxu0 0.0
        %869 = vmatpush1.msra.mxu0 0.0
        %870 = vmatprep.subr.mxu0 0.0
        %871 = vmatpush1.msra.mxu0 0.0
        %872 = vmatprep.subr.mxu0 0.0
        %873 = vmatpush1.msra.mxu0 0.0
        %874 = vmatprep.subr.mxu0 0.0
        %875 = vmatpush1.msra.mxu0 0.0
        %876 = vmatprep.subr.mxu0 0.0
        %877 = vmatpush1.msra.mxu0 0.0
        %878 = vmatprep.subr.mxu0 0.0
        %879 = vmatpush1.msra.mxu0 0.0
        %880 = vmatprep.subr.mxu0 0.0
        %881 = vmatpush1.msra.mxu0 0.0
        %882 = vmatprep.subr.mxu0 0.0
        %883 = vmatpush1.msra.mxu0 0.0
        %884 = vmatprep.subr.mxu0 0.0
        %885 = vmatpush1.msra.mxu0 0.0
        %886 = vmatprep.subr.mxu0 0.0
        %887 = vmatpush1.msra.mxu0 0.0
        %888 = vmatprep.subr.mxu0 0.0
        %889 = vmatpush1.msra.mxu0 0.0
        %890 = vmatprep.subr.mxu0 0.0
        %891 = vmatpush1.msra.mxu0 0.0
        %892 = vmatprep.subr.mxu0 0.0
        %893 = vmatpush1.msra.mxu0 0.0
        %894 = vmatprep.subr.mxu0 0.0
        %895 = vmatpush1.msra.mxu0 0.0
        %896 = vmatprep.subr.mxu0 0.0
        %897 = vmatpush1.msra.mxu0 0.0
        %898 = vmatprep.subr.mxu0 0.0
        %899 = vmatpush1.msra.mxu0 0.0
        %900 = vmatprep.subr.mxu0 0.0
        %901 = vmatpush1.msra.mxu0 0.0
        %902 = vmatprep.subr.mxu0 0.0
        %903 = vmatpush1.msra.mxu0 0.0
        %904 = vmatprep.mubr.f32.mxu0 0.0
        %905 = vmatmul.mubr.f32.gmra.mrb[0].mxu0 %v835
        %v906 = vpop.f32.mrb[0].mxu0
        %v907 = vadd.f32 0.0, %v906
        %v908 = vpop.f32.mrb[0].mxu0
        %909 = vmatprep.mubr.f32.mxu0 0.0
        %910 = vmatmul.mubr.f32.gmra.mrb[0].mxu0 %v838
        %v911 = vpop.f32.mrb[0].mxu0
        %v912 = vadd.f32 0.0, %v911
        %v913 = vpop.f32.mrb[0].mxu0
        %914 = vdwg.mxu0
        %915 = vrot.lane.b32.xlu0 %v712, 112
        %v916 = vpop.permute.xlu0 %915
        %917 = vrot.lane.b32.xlu0 %v713, 112
        %v918 = vpop.permute.xlu0 %917
        %919 = vrot.lane.b32.xlu0 %v702, 80
        %v920 = vpop.permute.xlu0 %919
        %921 = vrot.lane.b32.xlu0 %v707, 80
        %v922 = vpop.permute.xlu0 %921
        %v923 = vsel %vm720, %v916, 0
        %v925 = vsel %vm720, %v918, 0
        %v927 = vsel %vm720, %v920, 0
        %v929 = vsel %vm720, %v922, 0
        %931 = vmatprep.subr.mxu0 0.0
        %932 = vmatpush1.xpose.msra.mxu0 %v927
        %933 = vmatprep.subr.mxu0 0.0
        %934 = vmatpush1.xpose.msra.mxu0 %v929
        %935 = vmatprep.subr.mxu0 0.0
        %936 = vmatpush1.xpose.msra.mxu0 0.0
        %937 = vmatprep.subr.mxu0 0.0
        %938 = vmatpush1.xpose.msra.mxu0 0.0
        %939 = vmatprep.subr.mxu0 0.0
        %940 = vmatpush1.xpose.msra.mxu0 0.0
        %941 = vmatprep.subr.mxu0 0.0
        %942 = vmatpush1.xpose.msra.mxu0 0.0
        %943 = vmatprep.subr.mxu0 0.0
        %944 = vmatpush1.xpose.msra.mxu0 0.0
        %945 = vmatprep.subr.mxu0 0.0
        %946 = vmatpush1.xpose.msra.mxu0 0.0
        %947 = vmatprep.subr.mxu0 0.0
        %948 = vmatpush1.xpose.msra.mxu0 0.0
        %949 = vmatprep.subr.mxu0 0.0
        %950 = vmatpush1.xpose.msra.mxu0 0.0
        %951 = vmatprep.subr.mxu0 0.0
        %952 = vmatpush1.xpose.msra.mxu0 0.0
        %953 = vmatprep.subr.mxu0 0.0
        %954 = vmatpush1.xpose.msra.mxu0 0.0
        %955 = vmatprep.subr.mxu0 0.0
        %956 = vmatpush1.xpose.msra.mxu0 0.0
        %957 = vmatprep.subr.mxu0 0.0
        %958 = vmatpush1.xpose.msra.mxu0 0.0
        %959 = vmatprep.subr.mxu0 0.0
        %960 = vmatpush1.xpose.msra.mxu0 0.0
        %961 = vmatprep.subr.mxu0 0.0
        %962 = vmatpush1.xpose.msra.mxu0 0.0
        %963 = vmatprep.subr.mxu0 0.0
        %964 = vmatpush1.xpose.msra.mxu0 0.0
        %965 = vmatprep.subr.mxu0 0.0
        %966 = vmatpush1.xpose.msra.mxu0 0.0
        %967 = vmatprep.subr.mxu0 0.0
        %968 = vmatpush1.xpose.msra.mxu0 0.0
        %969 = vmatprep.subr.mxu0 0.0
        %970 = vmatpush1.xpose.msra.mxu0 0.0
        %971 = vmatprep.subr.mxu0 0.0
        %972 = vmatpush1.xpose.msra.mxu0 0.0
        %973 = vmatprep.subr.mxu0 0.0
        %974 = vmatpush1.xpose.msra.mxu0 0.0
        %975 = vmatprep.subr.mxu0 0.0
        %976 = vmatpush1.xpose.msra.mxu0 0.0
        %977 = vmatprep.subr.mxu0 0.0
        %978 = vmatpush1.xpose.msra.mxu0 0.0
        %979 = vmatprep.subr.mxu0 0.0
        %980 = vmatpush1.xpose.msra.mxu0 0.0
        %981 = vmatprep.subr.mxu0 0.0
        %982 = vmatpush1.xpose.msra.mxu0 0.0
        %983 = vmatprep.subr.mxu0 0.0
        %984 = vmatpush1.xpose.msra.mxu0 0.0
        %985 = vmatprep.subr.mxu0 0.0
        %986 = vmatpush1.xpose.msra.mxu0 0.0
        %987 = vmatprep.subr.mxu0 0.0
        %988 = vmatpush1.xpose.msra.mxu0 0.0
        %989 = vmatprep.subr.mxu0 0.0
        %990 = vmatpush1.xpose.msra.mxu0 0.0
        %991 = vmatprep.subr.mxu0 0.0
        %992 = vmatpush1.xpose.msra.mxu0 0.0
        %993 = vmatprep.subr.mxu0 0.0
        %994 = vmatpush1.xpose.msra.mxu0 0.0
        %995 = vmatprep.mubr.f32.mxu0 0.0
        %996 = vmatmul.mubr.f32.gmra.mrb[0].mxu0 %v923
        %v997 = vpop.f32.mrb[0].mxu0
        %v998 = vadd.f32 %v710, %v997
        %v999 = vpop.f32.mrb[0].mxu0
        %1000 = vmatprep.mubr.f32.mxu0 0.0
        %1001 = vmatmul.mubr.f32.gmra.mrb[0].mxu0 %v925
        %v1002 = vpop.f32.mrb[0].mxu0
        %v1003 = vadd.f32 %v711, %v1002
        %v1004 = vpop.f32.mrb[0].mxu0
        %1005 = vdwg.mxu0
        %v1006 = vsel %vm720, %v998, -inf
        %1007 = vmax.xlane.f32.xlu0 %v1006
        %v1008 = vpop.xlane.xlu0 %1007
        %v1009 = vsel %vm720, %v1003, -inf
        %1010 = vmax.xlane.f32.xlu0 %v1009
        %v1011 = vpop.xlane.xlu0 %1010
        %v1012 = vsub.f32 %v998, %v1008
        %v1013 = vsub.f32 %v1003, %v1011
        %v1014 = vmul.f32 %v1012, 1.442695
        %v1015 = vpow.pop %v1014
        %v1016 = vmul.f32 %v1013, 1.442695
        %v1017 = vpow.pop %v1016
        %v1018 = vsel %vm720, %v1015, 0.0
        %1019 = vadd.xlane.f32.xlu0 %v1018
        %v1020 = vpop.xlane.xlu0 %1019
        %v1021 = vsel %vm720, %v1017, 0.0
        %1022 = vadd.xlane.f32.xlu0 %v1021
        %v1023 = vpop.xlane.xlu0 %1022
        %v1024 = vrcp.pop %v1020
        %v1025 = vrcp.pop %v1023
        %v1026 = vmul.f32 %v1015, %v1024
        %v1027 = vmul.f32 %v1017, %v1025
        %1028 = vrot.lane.b32.xlu0 %v702, 48
        %v1029 = vpop.permute.xlu0 %1028
        %1030 = vrot.lane.b32.xlu0 %v707, 48
        %v1031 = vpop.permute.xlu0 %1030
        %v1035 = vsel %vm720, %v1026, 0
        %v1038 = vsel %vm720, %v1027, 0
        %1040 = vmatprep.subr.mxu0 0.0
        %1041 = vmatpush1.msra.mxu0 %v1029
        %1042 = vmatprep.subr.mxu0 0.0
        %1043 = vmatpush1.msra.mxu0 %v1031
        %1044 = vmatprep.subr.mxu0 0.0
        %1045 = vmatpush1.msra.mxu0 0.0
        %1046 = vmatprep.subr.mxu0 0.0
        %1047 = vmatpush1.msra.mxu0 0.0
        %1048 = vmatprep.subr.mxu0 0.0
        %1049 = vmatpush1.msra.mxu0 0.0
        %1050 = vmatprep.subr.mxu0 0.0
        %1051 = vmatpush1.msra.mxu0 0.0
        %1052 = vmatprep.subr.mxu0 0.0
        %1053 = vmatpush1.msra.mxu0 0.0
        %1054 = vmatprep.subr.mxu0 0.0
        %1055 = vmatpush1.msra.mxu0 0.0
        %1056 = vmatprep.subr.mxu0 0.0
        %1057 = vmatpush1.msra.mxu0 0.0
        %1058 = vmatprep.subr.mxu0 0.0
        %1059 = vmatpush1.msra.mxu0 0.0
        %1060 = vmatprep.subr.mxu0 0.0
        %1061 = vmatpush1.msra.mxu0 0.0
        %1062 = vmatprep.subr.mxu0 0.0
        %1063 = vmatpush1.msra.mxu0 0.0
        %1064 = vmatprep.subr.mxu0 0.0
        %1065 = vmatpush1.msra.mxu0 0.0
        %1066 = vmatprep.subr.mxu0 0.0
        %1067 = vmatpush1.msra.mxu0 0.0
        %1068 = vmatprep.subr.mxu0 0.0
        %1069 = vmatpush1.msra.mxu0 0.0
        %1070 = vmatprep.subr.mxu0 0.0
        %1071 = vmatpush1.msra.mxu0 0.0
        %1072 = vmatprep.subr.mxu0 0.0
        %1073 = vmatpush1.msra.mxu0 0.0
        %1074 = vmatprep.subr.mxu0 0.0
        %1075 = vmatpush1.msra.mxu0 0.0
        %1076 = vmatprep.subr.mxu0 0.0
        %1077 = vmatpush1.msra.mxu0 0.0
        %1078 = vmatprep.subr.mxu0 0.0
        %1079 = vmatpush1.msra.mxu0 0.0
        %1080 = vmatprep.subr.mxu0 0.0
        %1081 = vmatpush1.msra.mxu0 0.0
        %1082 = vmatprep.subr.mxu0 0.0
        %1083 = vmatpush1.msra.mxu0 0.0
        %1084 = vmatprep.subr.mxu0 0.0
        %1085 = vmatpush1.msra.mxu0 0.0
        %1086 = vmatprep.subr.mxu0 0.0
        %1087 = vmatpush1.msra.mxu0 0.0
        %1088 = vmatprep.subr.mxu0 0.0
        %1089 = vmatpush1.msra.mxu0 0.0
        %1090 = vmatprep.subr.mxu0 0.0
        %1091 = vmatpush1.msra.mxu0 0.0
        %1092 = vmatprep.subr.mxu0 0.0
        %1093 = vmatpush1.msra.mxu0 0.0
        %1094 = vmatprep.subr.mxu0 0.0
        %1095 = vmatpush1.msra.mxu0 0.0
        %1096 = vmatprep.subr.mxu0 0.0
        %1097 = vmatpush1.msra.mxu0 0.0
        %1098 = vmatprep.subr.mxu0 0.0
        %1099 = vmatpush1.msra.mxu0 0.0
        %1100 = vmatprep.subr.mxu0 0.0
        %1101 = vmatpush1.msra.mxu0 0.0
        %1102 = vmatprep.subr.mxu0 0.0
        %1103 = vmatpush1.msra.mxu0 0.0
        %1104 = vmatprep.mubr.f32.mxu0 0.0
        %1105 = vmatmul.mubr.f32.gmra.mrb[0].mxu0 %v1035
        %v1106 = vpop.f32.mrb[0].mxu0
        %v1107 = vadd.f32 0.0, %v1106
        %v1108 = vpop.f32.mrb[0].mxu0
        %1109 = vmatprep.mubr.f32.mxu0 0.0
        %1110 = vmatmul.mubr.f32.gmra.mrb[0].mxu0 %v1038
        %v1111 = vpop.f32.mrb[0].mxu0
        %v1112 = vadd.f32 0.0, %v1111
        %v1113 = vpop.f32.mrb[0].mxu0
        %1114 = vdwg.mxu0
        %1117 = vrot.lane.b32.xlu0 %v1107, 16
        %v1118 = vpop.permute.xlu0 %1117
        %1119 = vrot.lane.b32.xlu0 %v1112, 16
        %v1120 = vpop.permute.xlu0 %1119
        %v1123 = vsel %vm720, %v907, %v1118
        %v1124 = vsel %vm720, %v912, %v1120
        %s1125 = smul.u32 %s32, 8
        %s1126 = scalar_lea.vmem [#allocation8], %s1125
        %v1127 = vld [vmem:[%s1126] sm:$0x3f]
        %s1128 = scalar_lea.vmem %s5, %s615
        %v1129 = vld [vmem:[%s1128] sm:$0xff]
        %v1130 = vld [vmem:[%s1128 + $0x8] sm:$0xff]
        %v1131 = vld [vmem:[%s1128 + $0x10] sm:$0xff]
        %v1132 = vld [vmem:[%s1128 + $0x18] sm:$0xff]
        %v1133 = vlaneseq
        %v1134 = vshrl.u32 %v1133, 7
        %v1135 = vsub.s32 0, %v1134
        %v1136 = vrot.slane %v1127, %v1135
        %v1138 = vsel %vm512, %v1123, 0
        %v1141 = vsel %vm512, %v1124, 0
        %1143 = vmatprep.subr.mxu0 0.0
        %1144 = vmatpush1.msra.mxu0 %v1129
        %1145 = vmatprep.subr.mxu0 0.0
        %1146 = vmatpush1.msra.mxu0 %v1130
        %1147 = vmatprep.subr.mxu0 0.0
        %1148 = vmatpush1.msra.mxu0 %v1131
        %1149 = vmatprep.subr.mxu0 0.0
        %1150 = vmatpush1.msra.mxu0 %v1132
        %1151 = vmatprep.subr.mxu0 0.0
        %1152 = vmatpush1.msra.mxu0 0.0
        %1153 = vmatprep.subr.mxu0 0.0
        %1154 = vmatpush1.msra.mxu0 0.0
        %1155 = vmatprep.subr.mxu0 0.0
        %1156 = vmatpush1.msra.mxu0 0.0
        %1157 = vmatprep.subr.mxu0 0.0
        %1158 = vmatpush1.msra.mxu0 0.0
        %1159 = vmatprep.subr.mxu0 0.0
        %1160 = vmatpush1.msra.mxu0 0.0
        %1161 = vmatprep.subr.mxu0 0.0
        %1162 = vmatpush1.msra.mxu0 0.0
        %1163 = vmatprep.subr.mxu0 0.0
        %1164 = vmatpush1.msra.mxu0 0.0
        %1165 = vmatprep.subr.mxu0 0.0
        %1166 = vmatpush1.msra.mxu0 0.0
        %1167 = vmatprep.subr.mxu0 0.0
        %1168 = vmatpush1.msra.mxu0 0.0
        %1169 = vmatprep.subr.mxu0 0.0
        %1170 = vmatpush1.msra.mxu0 0.0
        %1171 = vmatprep.subr.mxu0 0.0
        %1172 = vmatpush1.msra.mxu0 0.0
        %1173 = vmatprep.subr.mxu0 0.0
        %1174 = vmatpush1.msra.mxu0 0.0
        %1175 = vmatprep.subr.mxu0 0.0
        %1176 = vmatpush1.msra.mxu0 0.0
        %1177 = vmatprep.subr.mxu0 0.0
        %1178 = vmatpush1.msra.mxu0 0.0
        %1179 = vmatprep.subr.mxu0 0.0
        %1180 = vmatpush1.msra.mxu0 0.0
        %1181 = vmatprep.subr.mxu0 0.0
        %1182 = vmatpush1.msra.mxu0 0.0
        %1183 = vmatprep.subr.mxu0 0.0
        %1184 = vmatpush1.msra.mxu0 0.0
        %1185 = vmatprep.subr.mxu0 0.0
        %1186 = vmatpush1.msra.mxu0 0.0
        %1187 = vmatprep.subr.mxu0 0.0
        %1188 = vmatpush1.msra.mxu0 0.0
        %1189 = vmatprep.subr.mxu0 0.0
        %1190 = vmatpush1.msra.mxu0 0.0
        %1191 = vmatprep.subr.mxu0 0.0
        %1192 = vmatpush1.msra.mxu0 0.0
        %1193 = vmatprep.subr.mxu0 0.0
        %1194 = vmatpush1.msra.mxu0 0.0
        %1195 = vmatprep.subr.mxu0 0.0
        %1196 = vmatpush1.msra.mxu0 0.0
        %1197 = vmatprep.subr.mxu0 0.0
        %1198 = vmatpush1.msra.mxu0 0.0
        %1199 = vmatprep.subr.mxu0 0.0
        %1200 = vmatpush1.msra.mxu0 0.0
        %1201 = vmatprep.subr.mxu0 0.0
        %1202 = vmatpush1.msra.mxu0 0.0
        %1203 = vmatprep.subr.mxu0 0.0
        %1204 = vmatpush1.msra.mxu0 0.0
        %1205 = vmatprep.subr.mxu0 0.0
        %1206 = vmatpush1.msra.mxu0 0.0
        %1207 = vmatprep.mubr.f32.mxu0 0.0
        %1208 = vmatmul.mubr.f32.gmra.mrb[0].mxu0 %v1138
        %v1209 = vpop.f32.mrb[0].mxu0
        %v1210 = vadd.f32 %v1136, %v1209
        %v1211 = vpop.f32.mrb[0].mxu0
        %1212 = vmatprep.mubr.f32.mxu0 0.0
        %1213 = vmatmul.mubr.f32.gmra.mrb[0].mxu0 %v1141
        %v1214 = vpop.f32.mrb[0].mxu0
        %v1215 = vadd.f32 %v1136, %v1214
        %v1216 = vpop.f32.mrb[0].mxu0
        %1217 = vdwg.mxu0
        %v1218 = vadd.f32 %v613, %v1210
        %v1219 = vadd.f32 %v614, %v1215
        %v1220 = vsel %vm512, %v1218, 0.0
        %1221 = vadd.xlane.f32.xlu0 %v1220
        %v1222 = vpop.xlane.xlu0 %1221
        %v1223 = vsel %vm512, %v1219, 0.0
        %1224 = vadd.xlane.f32.xlu0 %v1223
        %v1225 = vpop.xlane.xlu0 %1224
        %v1226 = vrcp.pop 32.0
        %v1227 = vmul.f32 %v1222, %v1226
        %v1228 = vmul.f32 %v1225, %v1226
        %v1229 = vsub.f32 %v1218, %v1227
        %v1230 = vsub.f32 %v1219, %v1228
        %v1231 = vmul.f32 %v1229, %v1229
        %v1232 = vmul.f32 %v1230, %v1230
        %v1233 = vsel %vm512, %v1231, 0.0
        %1234 = vadd.xlane.f32.xlu0 %v1233
        %v1235 = vpop.xlane.xlu0 %1234
        %v1236 = vsel %vm512, %v1232, 0.0
        %1237 = vadd.xlane.f32.xlu0 %v1236
        %v1238 = vpop.xlane.xlu0 %1237
        %v1239 = vmul.f32 %v1235, %v1226
        %v1240 = vmul.f32 %v1238, %v1226
        %v1241 = vadd.f32 %v1239, 1e-12
        %v1242 = vadd.f32 %v1240, 1e-12
        %v1243 = vrsqrt.pop %v1241
        %v1244 = vrsqrt.pop %v1242
        %v1245 = vmul.f32 %v1229, %v1243
        %v1246 = vmul.f32 %v1230, %v1244
        %v1247 = vlaneseq
        %v1248 = vshrl.u32 %v1247, 7
        %v1249 = vsub.s32 1, %v1248
        %v1250 = vrot.slane %v1127, %v1249
        %v1251 = vmul.f32 %v1245, %v1250
        %v1252 = vmul.f32 %v1246, %v1250
        %v1253 = vlaneseq
        %v1254 = vshrl.u32 %v1253, 7
        %v1255 = vsub.s32 2, %v1254
        %v1256 = vrot.slane %v1127, %v1255
        %v1257 = vadd.f32 %v1251, %v1256
        %v1258 = vadd.f32 %v1252, %v1256
        %s1259 = scalar_lea.vmem %s6, %s615
        %v1260 = vld [vmem:[%s1259] sm:$0xff]
        %v1261 = vld [vmem:[%s1259 + $0x8] sm:$0xff]
        %v1262 = vld [vmem:[%s1259 + $0x10] sm:$0xff]
        %v1263 = vld [vmem:[%s1259 + $0x18] sm:$0xff]
        %s1264 = scalar_lea.vmem %s7, %s32
        %v1265 = vld [vmem:[%s1264] sm:$0x1]
        %v1267 = vlaneseq
        %v1268 = vshrl.u32 %v1267, 7
        %v1269 = vsub.s32 0, %v1268
        %v1270 = vrot.slane %v1265, %v1269
        %v1273 = vsel %vm512, %v1257, 0
        %v1276 = vsel %vm512, %v1258, 0
        %1278 = vmatprep.subr.mxu0 0.0
        %1279 = vmatpush1.msra.mxu0 %v1260
        %1280 = vmatprep.subr.mxu0 0.0
        %1281 = vmatpush1.msra.mxu0 %v1261
        %1282 = vmatprep.subr.mxu0 0.0
        %1283 = vmatpush1.msra.mxu0 %v1262
        %1284 = vmatprep.subr.mxu0 0.0
        %1285 = vmatpush1.msra.mxu0 %v1263
        %1286 = vmatprep.subr.mxu0 0.0
        %1287 = vmatpush1.msra.mxu0 0.0
        %1288 = vmatprep.subr.mxu0 0.0
        %1289 = vmatpush1.msra.mxu0 0.0
        %1290 = vmatprep.subr.mxu0 0.0
        %1291 = vmatpush1.msra.mxu0 0.0
        %1292 = vmatprep.subr.mxu0 0.0
        %1293 = vmatpush1.msra.mxu0 0.0
        %1294 = vmatprep.subr.mxu0 0.0
        %1295 = vmatpush1.msra.mxu0 0.0
        %1296 = vmatprep.subr.mxu0 0.0
        %1297 = vmatpush1.msra.mxu0 0.0
        %1298 = vmatprep.subr.mxu0 0.0
        %1299 = vmatpush1.msra.mxu0 0.0
        %1300 = vmatprep.subr.mxu0 0.0
        %1301 = vmatpush1.msra.mxu0 0.0
        %1302 = vmatprep.subr.mxu0 0.0
        %1303 = vmatpush1.msra.mxu0 0.0
        %1304 = vmatprep.subr.mxu0 0.0
        %1305 = vmatpush1.msra.mxu0 0.0
        %1306 = vmatprep.subr.mxu0 0.0
        %1307 = vmatpush1.msra.mxu0 0.0
        %1308 = vmatprep.subr.mxu0 0.0
        %1309 = vmatpush1.msra.mxu0 0.0
        %1310 = vmatprep.subr.mxu0 0.0
        %1311 = vmatpush1.msra.mxu0 0.0
        %1312 = vmatprep.subr.mxu0 0.0
        %1313 = vmatpush1.msra.mxu0 0.0
        %1314 = vmatprep.subr.mxu0 0.0
        %1315 = vmatpush1.msra.mxu0 0.0
        %1316 = vmatprep.subr.mxu0 0.0
        %1317 = vmatpush1.msra.mxu0 0.0
        %1318 = vmatprep.subr.mxu0 0.0
        %1319 = vmatpush1.msra.mxu0 0.0
        %1320 = vmatprep.subr.mxu0 0.0
        %1321 = vmatpush1.msra.mxu0 0.0
        %1322 = vmatprep.subr.mxu0 0.0
        %1323 = vmatpush1.msra.mxu0 0.0
        %1324 = vmatprep.subr.mxu0 0.0
        %1325 = vmatpush1.msra.mxu0 0.0
        %1326 = vmatprep.subr.mxu0 0.0
        %1327 = vmatpush1.msra.mxu0 0.0
        %1328 = vmatprep.subr.mxu0 0.0
        %1329 = vmatpush1.msra.mxu0 0.0
        %1330 = vmatprep.subr.mxu0 0.0
        %1331 = vmatpush1.msra.mxu0 0.0
        %1332 = vmatprep.subr.mxu0 0.0
        %1333 = vmatpush1.msra.mxu0 0.0
        %1334 = vmatprep.subr.mxu0 0.0
        %1335 = vmatpush1.msra.mxu0 0.0
        %1336 = vmatprep.subr.mxu0 0.0
        %1337 = vmatpush1.msra.mxu0 0.0
        %1338 = vmatprep.subr.mxu0 0.0
        %1339 = vmatpush1.msra.mxu0 0.0
        %1340 = vmatprep.subr.mxu0 0.0
        %1341 = vmatpush1.msra.mxu0 0.0
        %1342 = vmatprep.mubr.f32.mxu0 0.0
        %1343 = vmatmul.mubr.f32.gmra.mrb[0].mxu0 %v1273
        %v1344 = vpop.f32.mrb[0].mxu0
        %v1345 = vadd.f32 %v1270, %v1344
        %v1346 = vpop.f32.mrb[0].mxu0
        %1347 = vmatprep.mubr.f32.mxu0 0.0
        %1348 = vmatmul.mubr.f32.gmra.mrb[0].mxu0 %v1276
        %v1349 = vpop.f32.mrb[0].mxu0
        %v1350 = vadd.f32 %v1270, %v1349
        %v1351 = vpop.f32.mrb[0].mxu0
        %1352 = vdwg.mxu0
        %v1353 = vmul.f32 %v1345, 0.5
        %v1354 = vmul.f32 %v1350, 0.5
        %v1355 = vmul.f32 %v1345, 0.044715
        %v1356 = vmul.f32 %v1350, 0.044715
        %v1357 = vmul.f32 %v1355, %v1345
        %v1358 = vmul.f32 %v1356, %v1350
        %v1359 = vmul.f32 %v1357, %v1345
        %v1360 = vmul.f32 %v1358, %v1350
        %v1361 = vadd.f32 %v1345, %v1359
        %v1362 = vadd.f32 %v1350, %v1360
        %v1363 = vmul.f32 %v1361, 0.7978846
        %v1364 = vmul.f32 %v1362, 0.7978846
        %v1365 = vtanh.pop %v1363
        %v1366 = vtanh.pop %v1364
        %v1367 = vadd.f32 %v1365, 1.0
        %v1368 = vadd.f32 %v1366, 1.0
        %v1369 = vmul.f32 %v1353, %v1367
        %v1370 = vmul.f32 %v1354, %v1368
        %s1371 = smul.u32 %s32, 64
        %s1372 = scalar_lea.vmem %s8, %s1371
        %v1373 = vld [vmem:[%s1372] sm:$0xff]
        %v1374 = vld [vmem:[%s1372 + $0x8] sm:$0xff]
        %v1375 = vld [vmem:[%s1372 + $0x10] sm:$0xff]
        %v1376 = vld [vmem:[%s1372 + $0x18] sm:$0xff]
        %v1377 = vld [vmem:[%s1372 + $0x20] sm:$0xff]
        %v1378 = vld [vmem:[%s1372 + $0x28] sm:$0xff]
        %v1379 = vld [vmem:[%s1372 + $0x30] sm:$0xff]
        %v1380 = vld [vmem:[%s1372 + $0x38] sm:$0xff]
        %v1381 = vlaneseq
        %v1382 = vshrl.u32 %v1381, 7
        %v1383 = vsub.s32 3, %v1382
        %v1384 = vrot.slane %v1127, %v1383
        %vm1385 = vcmask 523264
        %v1387 = vsel %vm1385, %v1369, 0
        %v1390 = vsel %vm1385, %v1370, 0
        %1392 = vmatprep.subr.mxu0 0.0
        %1393 = vmatpush1.msra.mxu0 %v1373
        %1394 = vmatprep.subr.mxu0 0.0
        %1395 = vmatpush1.msra.mxu0 %v1374
        %1396 = vmatprep.subr.mxu0 0.0
        %1397 = vmatpush1.msra.mxu0 %v1375
        %1398 = vmatprep.subr.mxu0 0.0
        %1399 = vmatpush1.msra.mxu0 %v1376
        %1400 = vmatprep.subr.mxu0 0.0
        %1401 = vmatpush1.msra.mxu0 %v1377
        %1402 = vmatprep.subr.mxu0 0.0
        %1403 = vmatpush1.msra.mxu0 %v1378
        %1404 = vmatprep.subr.mxu0 0.0
        %1405 = vmatpush1.msra.mxu0 %v1379
        %1406 = vmatprep.subr.mxu0 0.0
        %1407 = vmatpush1.msra.mxu0 %v1380
        %1408 = vmatprep.subr.mxu0 0.0
        %1409 = vmatpush1.msra.mxu0 0.0
        %1410 = vmatprep.subr.mxu0 0.0
        %1411 = vmatpush1.msra.mxu0 0.0
        %1412 = vmatprep.subr.mxu0 0.0
        %1413 = vmatpush1.msra.mxu0 0.0
        %1414 = vmatprep.subr.mxu0 0.0
        %1415 = vmatpush1.msra.mxu0 0.0
        %1416 = vmatprep.subr.mxu0 0.0
        %1417 = vmatpush1.msra.mxu0 0.0
        %1418 = vmatprep.subr.mxu0 0.0
        %1419 = vmatpush1.msra.mxu0 0.0
        %1420 = vmatprep.subr.mxu0 0.0
        %1421 = vmatpush1.msra.mxu0 0.0
        %1422 = vmatprep.subr.mxu0 0.0
        %1423 = vmatpush1.msra.mxu0 0.0
        %1424 = vmatprep.subr.mxu0 0.0
        %1425 = vmatpush1.msra.mxu0 0.0
        %1426 = vmatprep.subr.mxu0 0.0
        %1427 = vmatpush1.msra.mxu0 0.0
        %1428 = vmatprep.subr.mxu0 0.0
        %1429 = vmatpush1.msra.mxu0 0.0
        %1430 = vmatprep.subr.mxu0 0.0
        %1431 = vmatpush1.msra.mxu0 0.0
        %1432 = vmatprep.subr.mxu0 0.0
        %1433 = vmatpush1.msra.mxu0 0.0
        %1434 = vmatprep.subr.mxu0 0.0
        %1435 = vmatpush1.msra.mxu0 0.0
        %1436 = vmatprep.subr.mxu0 0.0
        %1437 = vmatpush1.msra.mxu0 0.0
        %1438 = vmatprep.subr.mxu0 0.0
        %1439 = vmatpush1.msra.mxu0 0.0
        %1440 = vmatprep.subr.mxu0 0.0
        %1441 = vmatpush1.msra.mxu0 0.0
        %1442 = vmatprep.subr.mxu0 0.0
        %1443 = vmatpush1.msra.mxu0 0.0
        %1444 = vmatprep.subr.mxu0 0.0
        %1445 = vmatpush1.msra.mxu0 0.0
        %1446 = vmatprep.subr.mxu0 0.0
        %1447 = vmatpush1.msra.mxu0 0.0
        %1448 = vmatprep.subr.mxu0 0.0
        %1449 = vmatpush1.msra.mxu0 0.0
        %1450 = vmatprep.subr.mxu0 0.0
        %1451 = vmatpush1.msra.mxu0 0.0
        %1452 = vmatprep.subr.mxu0 0.0
        %1453 = vmatpush1.msra.mxu0 0.0
        %1454 = vmatprep.subr.mxu0 0.0
        %1455 = vmatpush1.msra.mxu0 0.0
        %1456 = vmatprep.mubr.f32.mxu0 0.0
        %1457 = vmatmul.mubr.f32.gmra.mrb[0].mxu0 %v1387
        %v1458 = vpop.f32.mrb[0].mxu0
        %v1459 = vadd.f32 %v1384, %v1458
        %v1460 = vpop.f32.mrb[0].mxu0
        %1461 = vmatprep.mubr.f32.mxu0 0.0
        %1462 = vmatmul.mubr.f32.gmra.mrb[0].mxu0 %v1390
        %v1463 = vpop.f32.mrb[0].mxu0
        %v1464 = vadd.f32 %v1384, %v1463
        %v1465 = vpop.f32.mrb[0].mxu0
        %1466 = vdwg.mxu0
        %v1467 = vadd.f32 %v1257, %v1459
        %v1468 = vadd.f32 %v1258, %v1464
        %v1469 = vsel %vm512, %v1467, 0.0
        %1470 = vadd.xlane.f32.xlu0 %v1469
        %v1471 = vpop.xlane.xlu0 %1470
        %v1472 = vsel %vm512, %v1468, 0.0
        %1473 = vadd.xlane.f32.xlu0 %v1472
        %v1474 = vpop.xlane.xlu0 %1473
        %v1475 = vmul.f32 %v1471, %v1226
        %v1476 = vmul.f32 %v1474, %v1226
        %v1477 = vsub.f32 %v1467, %v1475
        %v1478 = vsub.f32 %v1468, %v1476
        %v1479 = vmul.f32 %v1477, %v1477
        %v1480 = vmul.f32 %v1478, %v1478
        %v1481 = vsel %vm512, %v1479, 0.0
        %1482 = vadd.xlane.f32.xlu0 %v1481
        %v1483 = vpop.xlane.xlu0 %1482
        %v1484 = vsel %vm512, %v1480, 0.0
        %1485 = vadd.xlane.f32.xlu0 %v1484
        %v1486 = vpop.xlane.xlu0 %1485
        %v1487 = vmul.f32 %v1483, %v1226
        %v1488 = vmul.f32 %v1486, %v1226
        %v1489 = vadd.f32 %v1487, 1e-12
        %v1490 = vadd.f32 %v1488, 1e-12
        %v1491 = vrsqrt.pop %v1489
        %v1492 = vrsqrt.pop %v1490
        %v1493 = vmul.f32 %v1477, %v1491
        %v1494 = vmul.f32 %v1478, %v1492
        %v1495 = vlaneseq
        %v1496 = vshrl.u32 %v1495, 7
        %v1497 = vsub.s32 4, %v1496
        %v1498 = vrot.slane %v1127, %v1497
        %v1499 = vmul.f32 %v1493, %v1498
        %v1500 = vmul.f32 %v1494, %v1498
        %v1501 = vlaneseq
        %v1502 = vshrl.u32 %v1501, 7
        %v1503 = vsub.s32 5, %v1502
        %v1504 = vrot.slane %v1127, %v1503
        %v1505 = vadd.f32 %v1499, %v1504
        %v1506 = vadd.f32 %v1500, %v1504
        %1507 = vst.msk [vmem:[#allocation10] sm:$0xff] %vm512, %v1505
        %1508 = vst.msk [vmem:[#allocation10 + $0x8] sm:$0xff] %vm512, %v1506
        // Predicated region
        $region85: #{tpu_custom_call.1} parent=67 // pred_check
          %p1509 = pneg %p319
        $region86: #{tpu_custom_call.1} parent=67 // pred_check_branch
          %1511 = sbr.rel (%p1509) target = $region88
        $region87: #{tpu_custom_call.1} parent=67 // pred_region
          %s1512 = smul.u32 2, %s31
          %s1514 = ssub.s32 256, 256
          %1515 = vsyncadd [#allocation4], %s1514
          %s1516 = smul.addr %s1512, 128
          %s1517 = scalar_lea.hbm %s12, %s1516
          %s1518 = sshll.u32 [#allocation10], 4
          %s1519 = int_to_ptr.vmem [resolvable:$true] %s1518
          %1524 = dma.vmem_to_hbm [thread:$0]  %s1519, 256, %s1517, [#allocation4], 128, 128, 8
        $region88: #{tpu_custom_call.1} parent=67 // pred_fallthru
          _
        // Predicated region
        $region89: #{tpu_custom_call.1} parent=67 // pred_check
          %p1525 = pneg %p319
        $region90: #{tpu_custom_call.1} parent=67 // pred_check_branch
          %1527 = sbr.rel (%p1525) target = $region92
        $region91: #{tpu_custom_call.1} parent=67 // pred_region
          %1528 = dma.done [#allocation4], 256
        $region92: #{tpu_custom_call.1} parent=67 // pred_fallthru
          _
      $region68: #{tpu_custom_call.1} parent=5 // pred_fallthru
        _
      %p1529 = scmp.le.s32.totalorder 2, %s22
      // Predicated region
      $region93: #{tpu_custom_call.1} parent=5 // pred_check
        %p1530 = pneg %p1529
      $region94: #{tpu_custom_call.1} parent=5 // pred_check_branch
        %1532 = sbr.rel (%p1530) target = $region96
      $region95: #{tpu_custom_call.1} parent=5 // pred_region
        %s1533 = ssub.s32 %s22, 2
      $region96: #{tpu_custom_call.1} parent=5 // pred_fallthru
        _
    $region6: #{tpu_custom_call.1} parent=1 // loop_footer
      %s26 = sadd.s32 1, %s22
    $region7: #{tpu_custom_call.1} parent=1 // loop_footer_branch
      %21 = sbr.rel target = $region3
    $region8: #{tpu_custom_call.1} parent=1 // loop_exit
      _
    %1534 = vsyncpa [#allocation3], 1
    %s1535 = scalar_lea.sflag [#allocation3], 1
    %1536 = vsyncpa %s1535, 1
    %1537 = vsyncpa [#allocation6], 1
    %1538 = vsyncpa [#allocation9], 1
    %1539 = vsyncpa [#allocation4], 1
    %s1540 = scalar_lea.sflag [#allocation4], 1
    %1541 = vsyncpa %s1540, 1

</llo_original>
